<compile_context>
chip_gen: v5e
topology: v5e:2x2
jax: 0.10.0
libtpu: 0.0.40
codegen_flags: <defaults>
</compile_context>

<pallas_src>
import functools

import jax
import jax.numpy as jnp
import numpy as np
from jax import lax
from jax.experimental import pallas as pl
from jax.experimental.pallas import tpu as pltpu


# ------------------------------- fused kernel -------------------------------

def _deconv_instnorm_kernel(x_ref, w_ref, b_ref, g_ref, bt_ref, o_ref,
                            sum_ref, sq_ref, acc_ref, *,
                            K, stride, lo, W_out, H_out, TR, R, eps):
    """One grid step = TR output rows of one batch element.

    x_ref  : (1, Cin, Hdp, Wdp)   zero-dilated + padded input (resident per n)
    w_ref  : (K, K, Cout, Cin)    flipped ConvTranspose2d tap matrices (resident)
    b_ref  : (Cout, 1)            conv bias
    g_ref  : (Cout, 1)            InstanceNorm gamma
    bt_ref : (Cout, 1)            InstanceNorm beta
    o_ref  : (1, Cout, H_out, W_out)  full per-image output block, VMEM-resident
                                      across the row-chunk axis
    sum_ref, sq_ref : (Cout, 1)   running per-channel sum / sum-of-squares
    acc_ref : (Cout, TR, W_out)   per-chunk conv accumulator
    """
    r = pl.program_id(1)
    Cout = b_ref.shape[0]

    @pl.when(r == 0)
    def _init():
        sum_ref[...] = jnp.zeros_like(sum_ref)
        sq_ref[...] = jnp.zeros_like(sq_ref)

    # Hoisted tap weights (Cout, Cin) and conv bias — loaded once per chunk.
    wtaps = [[w_ref[kh, kw] for kw in range(K)] for kh in range(K)]
    bias = b_ref[...]                                    # (Cout, 1)

    row0 = pl.multiple_of(r * TR, TR)                    # first output row of chunk
    # All dilated input rows this chunk can touch: one aligned dynamic load.
    xwin = x_ref[0, :, pl.ds(row0, TR + K - 1), :]       # (Cin, TR+K-1, Wdp)

    for j in range(TR):                                  # static unroll over rows
        acc = None
        for kh in range(K):
            # row0 is a multiple of the stride, so the parity of the dilated row
            # (row0 + j + kh - lo) is static; skip structurally-zero rows.
            if (j + kh - lo) % stride != 0:
                continue
            xrow = xwin[:, j + kh, :]                    # (Cin, Wdp)
            for kw in range(K):
                part = jnp.dot(wtaps[kh][kw], xrow[:, kw:kw + W_out],
                               preferred_element_type=jnp.float32)  # (Cout, W_out)
                acc = part if acc is None else acc + part
        if acc is None:                                  # only possible if K < stride
            acc = jnp.zeros((Cout, W_out), jnp.float32)
        acc_ref[:, j, :] = acc                           # static-row store (scratch)

    chunk = acc_ref[...] + bias[:, :, None]              # (Cout, TR, W_out)
    o_ref[0, :, pl.ds(row0, TR), :] = chunk              # aligned, lane-dense store

    # Single-pass statistics for InstanceNorm (biased variance, like PyTorch).
    sum_ref[...] += jnp.sum(jnp.sum(chunk, axis=2), axis=1, keepdims=True)
    sq_ref[...] += jnp.sum(jnp.sum(chunk * chunk, axis=2), axis=1, keepdims=True)

    @pl.when(r == R - 1)
    def _normalize():
        inv_hw = 1.0 / float(H_out * W_out)
        mean = sum_ref[...] * inv_hw                     # (Cout, 1)
        var = sq_ref[...] * inv_hw - mean * mean         # biased var (PyTorch IN)
        scale = lax.rsqrt(var + eps) * g_ref[...]        # (Cout, 1), rsqrt on EUP
        shift = bt_ref[...] - mean * scale               # (Cout, 1)
        scale3 = scale[:, :, None]
        shift3 = shift[:, :, None]

        def body(i, carry):
            i0 = pl.multiple_of(i * TR, TR)
            blk = o_ref[0, :, pl.ds(i0, TR), :]          # (Cout, TR, W_out)
            o_ref[0, :, pl.ds(i0, TR), :] = blk * scale3 + shift3
            return carry

        lax.fori_loop(0, R, body, 0)


# ------------------------------ forward wrapper ------------------------------

def deconv_layer_forward(x, weight, bias, gamma, beta, *,
                         kernel_size, stride, output_padding, eps=1e-5):
    """DeconvLayer.forward with norm='instance' (NCHW in / NCHW out).

    x:      (N, Cin, H, W)      float32, NCHW like PyTorch
    weight: (Cin, Cout, K, K)   ConvTranspose2d weight layout
    bias:   (Cout,)
    gamma, beta: (Cout,)        InstanceNorm2d affine parameters
    """
    N, Cin, H, W = x.shape
    K = kernel_size
    s = stride
    p = K // 2
    Cout = weight.shape[1]
    H_out = (H - 1) * s - 2 * p + K + output_padding
    W_out = (W - 1) * s - 2 * p + K + output_padding
    lo = K - 1 - p                       # top/left pad of the equivalent stride-1 conv
    Hdp = H_out + K - 1
    Wdp = W_out + K - 1

    # Zero-dilated + padded input (one strided scatter, stays in NCHW).
    xdp = jnp.zeros((N, Cin, Hdp, Wdp), jnp.float32)
    xdp = xdp.at[:, :, lo:lo + (H - 1) * s + 1:s,
                 lo:lo + (W - 1) * s + 1:s].set(x.astype(jnp.float32))

    # Flipped tap weights: wf[kh, kw, co, ci] = W[ci, co, K-1-kh, K-1-kw].
    wf = jnp.transpose(weight[:, :, ::-1, ::-1], (2, 3, 1, 0)).astype(jnp.float32)

    bias_c = bias.reshape(Cout, 1).astype(jnp.float32)
    gamma_c = gamma.reshape(Cout, 1).astype(jnp.float32)
    beta_c = beta.reshape(Cout, 1).astype(jnp.float32)

    # Row chunking: TR is a multiple of the stride so the zero-row parity
    # inside the kernel is fully static.
    TR = 8 if (H_out % 8 == 0 and 8 % s == 0) else H_out
    R = H_out // TR

    kernel = functools.partial(
        _deconv_instnorm_kernel,
        K=K, stride=s, lo=lo, W_out=W_out, H_out=H_out, TR=TR, R=R, eps=eps)

    return pl.pallas_call(
        kernel,
        out_shape=jax.ShapeDtypeStruct((N, Cout, H_out, W_out), jnp.float32),
        grid_spec=pltpu.PrefetchScalarGridSpec(
            num_scalar_prefetch=0,
            grid=(N, R),
            in_specs=[
                # per-image dilated input, resident across the row-chunk axis
                pl.BlockSpec((1, Cin, Hdp, Wdp), lambda n, r: (n, 0, 0, 0)),
                # tap weights / bias / gamma / beta: constant, resident
                pl.BlockSpec((K, K, Cout, Cin), lambda n, r: (0, 0, 0, 0)),
                pl.BlockSpec((Cout, 1), lambda n, r: (0, 0)),
                pl.BlockSpec((Cout, 1), lambda n, r: (0, 0)),
                pl.BlockSpec((Cout, 1), lambda n, r: (0, 0)),
            ],
            # full per-image output, resident across the row-chunk ("arbitrary") axis
            out_specs=pl.BlockSpec((1, Cout, H_out, W_out),
                                   lambda n, r: (n, 0, 0, 0)),
            scratch_shapes=[
                pltpu.VMEM((Cout, 1), jnp.float32),          # running sum
                pltpu.VMEM((Cout, 1), jnp.float32),          # running sum of squares
                pltpu.VMEM((Cout, TR, W_out), jnp.float32),  # per-chunk accumulator
            ],
        ),
        compiler_params=pltpu.CompilerParams(
            dimension_semantics=("parallel", "arbitrary"),
            vmem_limit_bytes=48 * 1024 * 1024),
    )(xdp, wf, bias_c, gamma_c, beta_c)


# --------------------------- pure-JAX reference ----------------------------

def _reference(x, weight, bias, gamma, beta, K, stride, output_padding, eps=1e-5):
    pad = K // 2
    w_t = jnp.transpose(weight[:, :, ::-1, ::-1], (1, 0, 2, 3))   # (Cout, Cin, K, K)
    lo = K - 1 - pad
    hi = K - 1 - pad + output_padding
    y = lax.conv_general_dilated(
        x, w_t, window_strides=(1, 1),
        padding=[(lo, hi), (lo, hi)],
        lhs_dilation=(stride, stride),
        dimension_numbers=("NCHW", "OIHW", "NCHW"))
    y = y + bias[None, :, None, None]
    mean = jnp.mean(y, axis=(2, 3), keepdims=True)
    var = jnp.mean((y - mean) ** 2, axis=(2, 3), keepdims=True)
    return ((y - mean) * lax.rsqrt(var + eps) * gamma[None, :, None, None]
            + beta[None, :, None, None])


# --------------------------------- main -------------------------------------

if __name__ == "__main__":
    key = jax.random.PRNGKey(0)
    k1, k2, k3, k4, k5 = jax.random.split(key, 5)

    # DeconvLayer(in_channels=4, out_channels=8, kernel_size=3, stride=2,
    #             output_padding=1, norm='instance')
    N, Cin, H, W = 2, 4, 16, 16
    Cout, K, stride, out_pad = 8, 3, 2, 1

    x = jax.random.normal(k1, (N, Cin, H, W), jnp.float32)
    weight = 0.1 * jax.random.normal(k2, (Cin, Cout, K, K), jnp.float32)
    bias = 0.1 * jax.random.normal(k3, (Cout,), jnp.float32)
    gamma = 1.0 + 0.1 * jax.random.normal(k4, (Cout,), jnp.float32)
    beta = 0.1 * jax.random.normal(k5, (Cout,), jnp.float32)

    out = deconv_layer_forward(x, weight, bias, gamma, beta,
                               kernel_size=K, stride=stride,
                               output_padding=out_pad)
    out = jax.block_until_ready(out)

    assert out.shape == (N, Cout, 32, 32), out.shape
    ref = _reference(x, weight, bias, gamma, beta, K, stride, out_pad)
    np.testing.assert_allclose(np.asarray(out), np.asarray(ref),
                               atol=2e-4, rtol=2e-4)

    print("KERNEL_OK")
</pallas_src>

<mosaic_0001>
module attributes {stable_mosaic.version = 11 : i64} {
  func.func @_deconv_instnorm_kernel(%arg0: i32, %arg1: i32, %arg2: memref<1x4x34x34xf32, #tpu.memory_space<vmem>>, %arg3: memref<3x3x8x4xf32, #tpu.memory_space<vmem>>, %arg4: memref<8x1xf32, #tpu.memory_space<vmem>>, %arg5: memref<8x1xf32, #tpu.memory_space<vmem>>, %arg6: memref<8x1xf32, #tpu.memory_space<vmem>>, %arg7: memref<1x8x32x32xf32, #tpu.memory_space<vmem>>, %arg8: memref<8x1xf32, #tpu.memory_space<vmem>>, %arg9: memref<8x1xf32, #tpu.memory_space<vmem>>, %arg10: memref<8x8x32xf32, #tpu.memory_space<vmem>>) attributes {dimension_semantics = [#tpu.dimension_semantics<parallel>, #tpu.dimension_semantics<arbitrary>], iteration_bounds = array<i64: 2, 4>, scalar_prefetch = 0 : i64, scratch_operands = 3 : i64, tpu.core_type = #tpu.core_type<tc>, window_params = [{transform_indices = @transform_0, window_bounds = array<i64: 1, 4, 34, 34>}, {pipeline_mode = #tpu.pipeline_mode<synchronous>, transform_indices = @transform_1, window_bounds = array<i64: 3, 3, 8, 4>}, {pipeline_mode = #tpu.pipeline_mode<synchronous>, transform_indices = @transform_2, window_bounds = array<i64: 8, 1>}, {pipeline_mode = #tpu.pipeline_mode<synchronous>, transform_indices = @transform_3, window_bounds = array<i64: 8, 1>}, {pipeline_mode = #tpu.pipeline_mode<synchronous>, transform_indices = @transform_4, window_bounds = array<i64: 8, 1>}, {transform_indices = @transform_5, window_bounds = array<i64: 1, 8, 32, 32>}]} {
    %c0_i32 = arith.constant 0 : i32
    %0 = arith.cmpi eq, %arg1, %c0_i32 : i32
    %1 = arith.extui %0 : i1 to i32
    %c0_i32_0 = arith.constant 0 : i32
    %2 = arith.cmpi ne, %1, %c0_i32_0 : i32
    scf.if %2 {
      %cst_112 = arith.constant 0.000000e+00 : f32
      %199 = vector.broadcast %cst_112 : f32 to vector<8x1xf32>
      %c0_113 = arith.constant 0 : index
      %c0_114 = arith.constant 0 : index
      %200 = vector.load %arg8[%c0_113, %c0_114] : memref<8x1xf32, #tpu.memory_space<vmem>>, vector<8x1xf32>
      tpu.vector_store %arg8[%c0_113, %c0_114], %199 {strides = array<i32>} : memref<8x1xf32, #tpu.memory_space<vmem>>, vector<8x1xf32>,
      %cst_115 = arith.constant 0.000000e+00 : f32
      %201 = vector.broadcast %cst_115 : f32 to vector<8x1xf32>
      %c0_116 = arith.constant 0 : index
      %c0_117 = arith.constant 0 : index
      %202 = vector.load %arg9[%c0_116, %c0_117] : memref<8x1xf32, #tpu.memory_space<vmem>>, vector<8x1xf32>
      tpu.vector_store %arg9[%c0_116, %c0_117], %201 {strides = array<i32>} : memref<8x1xf32, #tpu.memory_space<vmem>>, vector<8x1xf32>,
    } else {
    }
    %c0 = arith.constant 0 : index
    %c0_1 = arith.constant 0 : index
    %c0_2 = arith.constant 0 : index
    %c0_3 = arith.constant 0 : index
    %3 = vector.load %arg3[%c0, %c0_1, %c0_2, %c0_3] : memref<3x3x8x4xf32, #tpu.memory_space<vmem>>, vector<1x1x8x4xf32>
    %4 = vector.shape_cast %3 : vector<1x1x8x4xf32> to vector<8x4xf32>
    %c0_4 = arith.constant 0 : index
    %c1 = arith.constant 1 : index
    %c0_5 = arith.constant 0 : index
    %c0_6 = arith.constant 0 : index
    %5 = vector.load %arg3[%c0_4, %c1, %c0_5, %c0_6] : memref<3x3x8x4xf32, #tpu.memory_space<vmem>>, vector<1x1x8x4xf32>
    %6 = vector.shape_cast %5 : vector<1x1x8x4xf32> to vector<8x4xf32>
    %c0_7 = arith.constant 0 : index
    %c2 = arith.constant 2 : index
    %c0_8 = arith.constant 0 : index
    %c0_9 = arith.constant 0 : index
    %7 = vector.load %arg3[%c0_7, %c2, %c0_8, %c0_9] : memref<3x3x8x4xf32, #tpu.memory_space<vmem>>, vector<1x1x8x4xf32>
    %8 = vector.shape_cast %7 : vector<1x1x8x4xf32> to vector<8x4xf32>
    %c1_10 = arith.constant 1 : index
    %c0_11 = arith.constant 0 : index
    %c0_12 = arith.constant 0 : index
    %c0_13 = arith.constant 0 : index
    %9 = vector.load %arg3[%c1_10, %c0_11, %c0_12, %c0_13] : memref<3x3x8x4xf32, #tpu.memory_space<vmem>>, vector<1x1x8x4xf32>
    %10 = vector.shape_cast %9 : vector<1x1x8x4xf32> to vector<8x4xf32>
    %c1_14 = arith.constant 1 : index
    %c1_15 = arith.constant 1 : index
    %c0_16 = arith.constant 0 : index
    %c0_17 = arith.constant 0 : index
    %11 = vector.load %arg3[%c1_14, %c1_15, %c0_16, %c0_17] : memref<3x3x8x4xf32, #tpu.memory_space<vmem>>, vector<1x1x8x4xf32>
    %12 = vector.shape_cast %11 : vector<1x1x8x4xf32> to vector<8x4xf32>
    %c1_18 = arith.constant 1 : index
    %c2_19 = arith.constant 2 : index
    %c0_20 = arith.constant 0 : index
    %c0_21 = arith.constant 0 : index
    %13 = vector.load %arg3[%c1_18, %c2_19, %c0_20, %c0_21] : memref<3x3x8x4xf32, #tpu.memory_space<vmem>>, vector<1x1x8x4xf32>
    %14 = vector.shape_cast %13 : vector<1x1x8x4xf32> to vector<8x4xf32>
    %c2_22 = arith.constant 2 : index
    %c0_23 = arith.constant 0 : index
    %c0_24 = arith.constant 0 : index
    %c0_25 = arith.constant 0 : index
    %15 = vector.load %arg3[%c2_22, %c0_23, %c0_24, %c0_25] : memref<3x3x8x4xf32, #tpu.memory_space<vmem>>, vector<1x1x8x4xf32>
    %16 = vector.shape_cast %15 : vector<1x1x8x4xf32> to vector<8x4xf32>
    %c2_26 = arith.constant 2 : index
    %c1_27 = arith.constant 1 : index
    %c0_28 = arith.constant 0 : index
    %c0_29 = arith.constant 0 : index
    %17 = vector.load %arg3[%c2_26, %c1_27, %c0_28, %c0_29] : memref<3x3x8x4xf32, #tpu.memory_space<vmem>>, vector<1x1x8x4xf32>
    %18 = vector.shape_cast %17 : vector<1x1x8x4xf32> to vector<8x4xf32>
    %c2_30 = arith.constant 2 : index
    %c2_31 = arith.constant 2 : index
    %c0_32 = arith.constant 0 : index
    %c0_33 = arith.constant 0 : index
    %19 = vector.load %arg3[%c2_30, %c2_31, %c0_32, %c0_33] : memref<3x3x8x4xf32, #tpu.memory_space<vmem>>, vector<1x1x8x4xf32>
    %20 = vector.shape_cast %19 : vector<1x1x8x4xf32> to vector<8x4xf32>
    %c0_34 = arith.constant 0 : index
    %c0_35 = arith.constant 0 : index
    %21 = vector.load %arg4[%c0_34, %c0_35] : memref<8x1xf32, #tpu.memory_space<vmem>>, vector<8x1xf32>
    %c8_i32 = arith.constant 8 : i32
    %22 = arith.muli %arg1, %c8_i32 : i32
    %23 = tpu.assume_multiple %22, 8 : i32
    %c0_36 = arith.constant 0 : index
    %c0_37 = arith.constant 0 : index
    %24 = arith.index_cast %23 : i32 to index
    %c0_38 = arith.constant 0 : index
    %25 = vector.load %arg2[%c0_36, %c0_37, %24, %c0_38] : memref<1x4x34x34xf32, #tpu.memory_space<vmem>>, vector<1x4x10x34xf32>
    %26 = vector.shape_cast %25 : vector<1x4x10x34xf32> to vector<4x10x34xf32>
    %27 = vector.extract_strided_slice %26 {offsets = [0, 1, 0], sizes = [4, 1, 34], strides = [1, 1, 1]} : vector<4x10x34xf32> to vector<4x1x34xf32>
    %28 = vector.shape_cast %27 : vector<4x1x34xf32> to vector<4x34xf32>
    %29 = vector.extract_strided_slice %28 {offsets = [0, 0], sizes = [4, 32], strides = [1, 1]} : vector<4x34xf32> to vector<4x32xf32>
    %cst = arith.constant dense<0.000000e+00> : vector<8x32xf32>
    %30 = tpu.matmul %10, %29, %cst {dimension_numbers = #tpu.dot_dimension_numbers<[1], [0], [0], [1], [0, 0, 1, 1], [], []>} : vector<8x4xf32>, vector<4x32xf32>, vector<8x32xf32> -> vector<8x32xf32>
    %31 = vector.extract_strided_slice %28 {offsets = [0, 1], sizes = [4, 32], strides = [1, 1]} : vector<4x34xf32> to vector<4x32xf32>
    %cst_39 = arith.constant dense<0.000000e+00> : vector<8x32xf32>
    %32 = tpu.matmul %12, %31, %cst_39 {dimension_numbers = #tpu.dot_dimension_numbers<[1], [0], [0], [1], [0, 0, 1, 1], [], []>} : vector<8x4xf32>, vector<4x32xf32>, vector<8x32xf32> -> vector<8x32xf32>
    %33 = arith.addf %30, %32 : vector<8x32xf32>
    %34 = vector.extract_strided_slice %28 {offsets = [0, 2], sizes = [4, 32], strides = [1, 1]} : vector<4x34xf32> to vector<4x32xf32>
    %cst_40 = arith.constant dense<0.000000e+00> : vector<8x32xf32>
    %35 = tpu.matmul %14, %34, %cst_40 {dimension_numbers = #tpu.dot_dimension_numbers<[1], [0], [0], [1], [0, 0, 1, 1], [], []>} : vector<8x4xf32>, vector<4x32xf32>, vector<8x32xf32> -> vector<8x32xf32>
    %36 = arith.addf %33, %35 : vector<8x32xf32>
    %c0_41 = arith.constant 0 : index
    %c0_42 = arith.constant 0 : index
    %c0_43 = arith.constant 0 : index
    %37 = vector.load %arg10[%c0_41, %c0_42, %c0_43] : memref<8x8x32xf32, #tpu.memory_space<vmem>>, vector<8x1x32xf32>
    %38 = vector.shape_cast %37 : vector<8x1x32xf32> to vector<8x32xf32>
    %39 = vector.shape_cast %36 : vector<8x32xf32> to vector<8x1x32xf32>
    tpu.vector_store %arg10[%c0_41, %c0_42, %c0_43], %39 {strides = array<i32>} : memref<8x8x32xf32, #tpu.memory_space<vmem>>, vector<8x1x32xf32>,
    %40 = vector.extract_strided_slice %26 {offsets = [0, 1, 0], sizes = [4, 1, 34], strides = [1, 1, 1]} : vector<4x10x34xf32> to vector<4x1x34xf32>
    %41 = vector.shape_cast %40 : vector<4x1x34xf32> to vector<4x34xf32>
    %42 = vector.extract_strided_slice %41 {offsets = [0, 0], sizes = [4, 32], strides = [1, 1]} : vector<4x34xf32> to vector<4x32xf32>
    %cst_44 = arith.constant dense<0.000000e+00> : vector<8x32xf32>
    %43 = tpu.matmul %4, %42, %cst_44 {dimension_numbers = #tpu.dot_dimension_numbers<[1], [0], [0], [1], [0, 0, 1, 1], [], []>} : vector<8x4xf32>, vector<4x32xf32>, vector<8x32xf32> -> vector<8x32xf32>
    %44 = vector.extract_strided_slice %41 {offsets = [0, 1], sizes = [4, 32], strides = [1, 1]} : vector<4x34xf32> to vector<4x32xf32>
    %cst_45 = arith.constant dense<0.000000e+00> : vector<8x32xf32>
    %45 = tpu.matmul %6, %44, %cst_45 {dimension_numbers = #tpu.dot_dimension_numbers<[1], [0], [0], [1], [0, 0, 1, 1], [], []>} : vector<8x4xf32>, vector<4x32xf32>, vector<8x32xf32> -> vector<8x32xf32>
    %46 = arith.addf %43, %45 : vector<8x32xf32>
    %47 = vector.extract_strided_slice %41 {offsets = [0, 2], sizes = [4, 32], strides = [1, 1]} : vector<4x34xf32> to vector<4x32xf32>
    %cst_46 = arith.constant dense<0.000000e+00> : vector<8x32xf32>
    %48 = tpu.matmul %8, %47, %cst_46 {dimension_numbers = #tpu.dot_dimension_numbers<[1], [0], [0], [1], [0, 0, 1, 1], [], []>} : vector<8x4xf32>, vector<4x32xf32>, vector<8x32xf32> -> vector<8x32xf32>
    %49 = arith.addf %46, %48 : vector<8x32xf32>
    %50 = vector.extract_strided_slice %26 {offsets = [0, 3, 0], sizes = [4, 1, 34], strides = [1, 1, 1]} : vector<4x10x34xf32> to vector<4x1x34xf32>
    %51 = vector.shape_cast %50 : vector<4x1x34xf32> to vector<4x34xf32>
    %52 = vector.extract_strided_slice %51 {offsets = [0, 0], sizes = [4, 32], strides = [1, 1]} : vector<4x34xf32> to vector<4x32xf32>
    %cst_47 = arith.constant dense<0.000000e+00> : vector<8x32xf32>
    %53 = tpu.matmul %16, %52, %cst_47 {dimension_numbers = #tpu.dot_dimension_numbers<[1], [0], [0], [1], [0, 0, 1, 1], [], []>} : vector<8x4xf32>, vector<4x32xf32>, vector<8x32xf32> -> vector<8x32xf32>
    %54 = arith.addf %49, %53 : vector<8x32xf32>
    %55 = vector.extract_strided_slice %51 {offsets = [0, 1], sizes = [4, 32], strides = [1, 1]} : vector<4x34xf32> to vector<4x32xf32>
    %cst_48 = arith.constant dense<0.000000e+00> : vector<8x32xf32>
    %56 = tpu.matmul %18, %55, %cst_48 {dimension_numbers = #tpu.dot_dimension_numbers<[1], [0], [0], [1], [0, 0, 1, 1], [], []>} : vector<8x4xf32>, vector<4x32xf32>, vector<8x32xf32> -> vector<8x32xf32>
    %57 = arith.addf %54, %56 : vector<8x32xf32>
    %58 = vector.extract_strided_slice %51 {offsets = [0, 2], sizes = [4, 32], strides = [1, 1]} : vector<4x34xf32> to vector<4x32xf32>
    %cst_49 = arith.constant dense<0.000000e+00> : vector<8x32xf32>
    %59 = tpu.matmul %20, %58, %cst_49 {dimension_numbers = #tpu.dot_dimension_numbers<[1], [0], [0], [1], [0, 0, 1, 1], [], []>} : vector<8x4xf32>, vector<4x32xf32>, vector<8x32xf32> -> vector<8x32xf32>
    %60 = arith.addf %57, %59 : vector<8x32xf32>
    %c0_50 = arith.constant 0 : index
    %c1_51 = arith.constant 1 : index
    %c0_52 = arith.constant 0 : index
    %61 = vector.load %arg10[%c0_50, %c1_51, %c0_52] : memref<8x8x32xf32, #tpu.memory_space<vmem>>, vector<8x1x32xf32>
    %62 = vector.shape_cast %61 : vector<8x1x32xf32> to vector<8x32xf32>
    %63 = vector.shape_cast %60 : vector<8x32xf32> to vector<8x1x32xf32>
    tpu.vector_store %arg10[%c0_50, %c1_51, %c0_52], %63 {strides = array<i32>} : memref<8x8x32xf32, #tpu.memory_space<vmem>>, vector<8x1x32xf32>,
    %64 = vector.extract_strided_slice %26 {offsets = [0, 3, 0], sizes = [4, 1, 34], strides = [1, 1, 1]} : vector<4x10x34xf32> to vector<4x1x34xf32>
    %65 = vector.shape_cast %64 : vector<4x1x34xf32> to vector<4x34xf32>
    %66 = vector.extract_strided_slice %65 {offsets = [0, 0], sizes = [4, 32], strides = [1, 1]} : vector<4x34xf32> to vector<4x32xf32>
    %cst_53 = arith.constant dense<0.000000e+00> : vector<8x32xf32>
    %67 = tpu.matmul %10, %66, %cst_53 {dimension_numbers = #tpu.dot_dimension_numbers<[1], [0], [0], [1], [0, 0, 1, 1], [], []>} : vector<8x4xf32>, vector<4x32xf32>, vector<8x32xf32> -> vector<8x32xf32>
    %68 = vector.extract_strided_slice %65 {offsets = [0, 1], sizes = [4, 32], strides = [1, 1]} : vector<4x34xf32> to vector<4x32xf32>
    %cst_54 = arith.constant dense<0.000000e+00> : vector<8x32xf32>
    %69 = tpu.matmul %12, %68, %cst_54 {dimension_numbers = #tpu.dot_dimension_numbers<[1], [0], [0], [1], [0, 0, 1, 1], [], []>} : vector<8x4xf32>, vector<4x32xf32>, vector<8x32xf32> -> vector<8x32xf32>
    %70 = arith.addf %67, %69 : vector<8x32xf32>
    %71 = vector.extract_strided_slice %65 {offsets = [0, 2], sizes = [4, 32], strides = [1, 1]} : vector<4x34xf32> to vector<4x32xf32>
    %cst_55 = arith.constant dense<0.000000e+00> : vector<8x32xf32>
    %72 = tpu.matmul %14, %71, %cst_55 {dimension_numbers = #tpu.dot_dimension_numbers<[1], [0], [0], [1], [0, 0, 1, 1], [], []>} : vector<8x4xf32>, vector<4x32xf32>, vector<8x32xf32> -> vector<8x32xf32>
    %73 = arith.addf %70, %72 : vector<8x32xf32>
    %c0_56 = arith.constant 0 : index
    %c2_57 = arith.constant 2 : index
    %c0_58 = arith.constant 0 : index
    %74 = vector.load %arg10[%c0_56, %c2_57, %c0_58] : memref<8x8x32xf32, #tpu.memory_space<vmem>>, vector<8x1x32xf32>
    %75 = vector.shape_cast %74 : vector<8x1x32xf32> to vector<8x32xf32>
    %76 = vector.shape_cast %73 : vector<8x32xf32> to vector<8x1x32xf32>
    tpu.vector_store %arg10[%c0_56, %c2_57, %c0_58], %76 {strides = array<i32>} : memref<8x8x32xf32, #tpu.memory_space<vmem>>, vector<8x1x32xf32>,
    %77 = vector.extract_strided_slice %26 {offsets = [0, 3, 0], sizes = [4, 1, 34], strides = [1, 1, 1]} : vector<4x10x34xf32> to vector<4x1x34xf32>
    %78 = vector.shape_cast %77 : vector<4x1x34xf32> to vector<4x34xf32>
    %79 = vector.extract_strided_slice %78 {offsets = [0, 0], sizes = [4, 32], strides = [1, 1]} : vector<4x34xf32> to vector<4x32xf32>
    %cst_59 = arith.constant dense<0.000000e+00> : vector<8x32xf32>
    %80 = tpu.matmul %4, %79, %cst_59 {dimension_numbers = #tpu.dot_dimension_numbers<[1], [0], [0], [1], [0, 0, 1, 1], [], []>} : vector<8x4xf32>, vector<4x32xf32>, vector<8x32xf32> -> vector<8x32xf32>
    %81 = vector.extract_strided_slice %78 {offsets = [0, 1], sizes = [4, 32], strides = [1, 1]} : vector<4x34xf32> to vector<4x32xf32>
    %cst_60 = arith.constant dense<0.000000e+00> : vector<8x32xf32>
    %82 = tpu.matmul %6, %81, %cst_60 {dimension_numbers = #tpu.dot_dimension_numbers<[1], [0], [0], [1], [0, 0, 1, 1], [], []>} : vector<8x4xf32>, vector<4x32xf32>, vector<8x32xf32> -> vector<8x32xf32>
    %83 = arith.addf %80, %82 : vector<8x32xf32>
    %84 = vector.extract_strided_slice %78 {offsets = [0, 2], sizes = [4, 32], strides = [1, 1]} : vector<4x34xf32> to vector<4x32xf32>
    %cst_61 = arith.constant dense<0.000000e+00> : vector<8x32xf32>
    %85 = tpu.matmul %8, %84, %cst_61 {dimension_numbers = #tpu.dot_dimension_numbers<[1], [0], [0], [1], [0, 0, 1, 1], [], []>} : vector<8x4xf32>, vector<4x32xf32>, vector<8x32xf32> -> vector<8x32xf32>
    %86 = arith.addf %83, %85 : vector<8x32xf32>
    %87 = vector.extract_strided_slice %26 {offsets = [0, 5, 0], sizes = [4, 1, 34], strides = [1, 1, 1]} : vector<4x10x34xf32> to vector<4x1x34xf32>
    %88 = vector.shape_cast %87 : vector<4x1x34xf32> to vector<4x34xf32>
    %89 = vector.extract_strided_slice %88 {offsets = [0, 0], sizes = [4, 32], strides = [1, 1]} : vector<4x34xf32> to vector<4x32xf32>
    %cst_62 = arith.constant dense<0.000000e+00> : vector<8x32xf32>
    %90 = tpu.matmul %16, %89, %cst_62 {dimension_numbers = #tpu.dot_dimension_numbers<[1], [0], [0], [1], [0, 0, 1, 1], [], []>} : vector<8x4xf32>, vector<4x32xf32>, vector<8x32xf32> -> vector<8x32xf32>
    %91 = arith.addf %86, %90 : vector<8x32xf32>
    %92 = vector.extract_strided_slice %88 {offsets = [0, 1], sizes = [4, 32], strides = [1, 1]} : vector<4x34xf32> to vector<4x32xf32>
    %cst_63 = arith.constant dense<0.000000e+00> : vector<8x32xf32>
    %93 = tpu.matmul %18, %92, %cst_63 {dimension_numbers = #tpu.dot_dimension_numbers<[1], [0], [0], [1], [0, 0, 1, 1], [], []>} : vector<8x4xf32>, vector<4x32xf32>, vector<8x32xf32> -> vector<8x32xf32>
    %94 = arith.addf %91, %93 : vector<8x32xf32>
    %95 = vector.extract_strided_slice %88 {offsets = [0, 2], sizes = [4, 32], strides = [1, 1]} : vector<4x34xf32> to vector<4x32xf32>
    %cst_64 = arith.constant dense<0.000000e+00> : vector<8x32xf32>
    %96 = tpu.matmul %20, %95, %cst_64 {dimension_numbers = #tpu.dot_dimension_numbers<[1], [0], [0], [1], [0, 0, 1, 1], [], []>} : vector<8x4xf32>, vector<4x32xf32>, vector<8x32xf32> -> vector<8x32xf32>
    %97 = arith.addf %94, %96 : vector<8x32xf32>
    %c0_65 = arith.constant 0 : index
    %c3 = arith.constant 3 : index
    %c0_66 = arith.constant 0 : index
    %98 = vector.load %arg10[%c0_65, %c3, %c0_66] : memref<8x8x32xf32, #tpu.memory_space<vmem>>, vector<8x1x32xf32>
    %99 = vector.shape_cast %98 : vector<8x1x32xf32> to vector<8x32xf32>
    %100 = vector.shape_cast %97 : vector<8x32xf32> to vector<8x1x32xf32>
    tpu.vector_store %arg10[%c0_65, %c3, %c0_66], %100 {strides = array<i32>} : memref<8x8x32xf32, #tpu.memory_space<vmem>>, vector<8x1x32xf32>,
    %101 = vector.extract_strided_slice %26 {offsets = [0, 5, 0], sizes = [4, 1, 34], strides = [1, 1, 1]} : vector<4x10x34xf32> to vector<4x1x34xf32>
    %102 = vector.shape_cast %101 : vector<4x1x34xf32> to vector<4x34xf32>
    %103 = vector.extract_strided_slice %102 {offsets = [0, 0], sizes = [4, 32], strides = [1, 1]} : vector<4x34xf32> to vector<4x32xf32>
    %cst_67 = arith.constant dense<0.000000e+00> : vector<8x32xf32>
    %104 = tpu.matmul %10, %103, %cst_67 {dimension_numbers = #tpu.dot_dimension_numbers<[1], [0], [0], [1], [0, 0, 1, 1], [], []>} : vector<8x4xf32>, vector<4x32xf32>, vector<8x32xf32> -> vector<8x32xf32>
    %105 = vector.extract_strided_slice %102 {offsets = [0, 1], sizes = [4, 32], strides = [1, 1]} : vector<4x34xf32> to vector<4x32xf32>
    %cst_68 = arith.constant dense<0.000000e+00> : vector<8x32xf32>
    %106 = tpu.matmul %12, %105, %cst_68 {dimension_numbers = #tpu.dot_dimension_numbers<[1], [0], [0], [1], [0, 0, 1, 1], [], []>} : vector<8x4xf32>, vector<4x32xf32>, vector<8x32xf32> -> vector<8x32xf32>
    %107 = arith.addf %104, %106 : vector<8x32xf32>
    %108 = vector.extract_strided_slice %102 {offsets = [0, 2], sizes = [4, 32], strides = [1, 1]} : vector<4x34xf32> to vector<4x32xf32>
    %cst_69 = arith.constant dense<0.000000e+00> : vector<8x32xf32>
    %109 = tpu.matmul %14, %108, %cst_69 {dimension_numbers = #tpu.dot_dimension_numbers<[1], [0], [0], [1], [0, 0, 1, 1], [], []>} : vector<8x4xf32>, vector<4x32xf32>, vector<8x32xf32> -> vector<8x32xf32>
    %110 = arith.addf %107, %109 : vector<8x32xf32>
    %c0_70 = arith.constant 0 : index
    %c4 = arith.constant 4 : index
    %c0_71 = arith.constant 0 : index
    %111 = vector.load %arg10[%c0_70, %c4, %c0_71] : memref<8x8x32xf32, #tpu.memory_space<vmem>>, vector<8x1x32xf32>
    %112 = vector.shape_cast %111 : vector<8x1x32xf32> to vector<8x32xf32>
    %113 = vector.shape_cast %110 : vector<8x32xf32> to vector<8x1x32xf32>
    tpu.vector_store %arg10[%c0_70, %c4, %c0_71], %113 {strides = array<i32>} : memref<8x8x32xf32, #tpu.memory_space<vmem>>, vector<8x1x32xf32>,
    %114 = vector.extract_strided_slice %26 {offsets = [0, 5, 0], sizes = [4, 1, 34], strides = [1, 1, 1]} : vector<4x10x34xf32> to vector<4x1x34xf32>
    %115 = vector.shape_cast %114 : vector<4x1x34xf32> to vector<4x34xf32>
    %116 = vector.extract_strided_slice %115 {offsets = [0, 0], sizes = [4, 32], strides = [1, 1]} : vector<4x34xf32> to vector<4x32xf32>
    %cst_72 = arith.constant dense<0.000000e+00> : vector<8x32xf32>
    %117 = tpu.matmul %4, %116, %cst_72 {dimension_numbers = #tpu.dot_dimension_numbers<[1], [0], [0], [1], [0, 0, 1, 1], [], []>} : vector<8x4xf32>, vector<4x32xf32>, vector<8x32xf32> -> vector<8x32xf32>
    %118 = vector.extract_strided_slice %115 {offsets = [0, 1], sizes = [4, 32], strides = [1, 1]} : vector<4x34xf32> to vector<4x32xf32>
    %cst_73 = arith.constant dense<0.000000e+00> : vector<8x32xf32>
    %119 = tpu.matmul %6, %118, %cst_73 {dimension_numbers = #tpu.dot_dimension_numbers<[1], [0], [0], [1], [0, 0, 1, 1], [], []>} : vector<8x4xf32>, vector<4x32xf32>, vector<8x32xf32> -> vector<8x32xf32>
    %120 = arith.addf %117, %119 : vector<8x32xf32>
    %121 = vector.extract_strided_slice %115 {offsets = [0, 2], sizes = [4, 32], strides = [1, 1]} : vector<4x34xf32> to vector<4x32xf32>
    %cst_74 = arith.constant dense<0.000000e+00> : vector<8x32xf32>
    %122 = tpu.matmul %8, %121, %cst_74 {dimension_numbers = #tpu.dot_dimension_numbers<[1], [0], [0], [1], [0, 0, 1, 1], [], []>} : vector<8x4xf32>, vector<4x32xf32>, vector<8x32xf32> -> vector<8x32xf32>
    %123 = arith.addf %120, %122 : vector<8x32xf32>
    %124 = vector.extract_strided_slice %26 {offsets = [0, 7, 0], sizes = [4, 1, 34], strides = [1, 1, 1]} : vector<4x10x34xf32> to vector<4x1x34xf32>
    %125 = vector.shape_cast %124 : vector<4x1x34xf32> to vector<4x34xf32>
    %126 = vector.extract_strided_slice %125 {offsets = [0, 0], sizes = [4, 32], strides = [1, 1]} : vector<4x34xf32> to vector<4x32xf32>
    %cst_75 = arith.constant dense<0.000000e+00> : vector<8x32xf32>
    %127 = tpu.matmul %16, %126, %cst_75 {dimension_numbers = #tpu.dot_dimension_numbers<[1], [0], [0], [1], [0, 0, 1, 1], [], []>} : vector<8x4xf32>, vector<4x32xf32>, vector<8x32xf32> -> vector<8x32xf32>
    %128 = arith.addf %123, %127 : vector<8x32xf32>
    %129 = vector.extract_strided_slice %125 {offsets = [0, 1], sizes = [4, 32], strides = [1, 1]} : vector<4x34xf32> to vector<4x32xf32>
    %cst_76 = arith.constant dense<0.000000e+00> : vector<8x32xf32>
    %130 = tpu.matmul %18, %129, %cst_76 {dimension_numbers = #tpu.dot_dimension_numbers<[1], [0], [0], [1], [0, 0, 1, 1], [], []>} : vector<8x4xf32>, vector<4x32xf32>, vector<8x32xf32> -> vector<8x32xf32>
    %131 = arith.addf %128, %130 : vector<8x32xf32>
    %132 = vector.extract_strided_slice %125 {offsets = [0, 2], sizes = [4, 32], strides = [1, 1]} : vector<4x34xf32> to vector<4x32xf32>
    %cst_77 = arith.constant dense<0.000000e+00> : vector<8x32xf32>
    %133 = tpu.matmul %20, %132, %cst_77 {dimension_numbers = #tpu.dot_dimension_numbers<[1], [0], [0], [1], [0, 0, 1, 1], [], []>} : vector<8x4xf32>, vector<4x32xf32>, vector<8x32xf32> -> vector<8x32xf32>
    %134 = arith.addf %131, %133 : vector<8x32xf32>
    %c0_78 = arith.constant 0 : index
    %c5 = arith.constant 5 : index
    %c0_79 = arith.constant 0 : index
    %135 = vector.load %arg10[%c0_78, %c5, %c0_79] : memref<8x8x32xf32, #tpu.memory_space<vmem>>, vector<8x1x32xf32>
    %136 = vector.shape_cast %135 : vector<8x1x32xf32> to vector<8x32xf32>
    %137 = vector.shape_cast %134 : vector<8x32xf32> to vector<8x1x32xf32>
    tpu.vector_store %arg10[%c0_78, %c5, %c0_79], %137 {strides = array<i32>} : memref<8x8x32xf32, #tpu.memory_space<vmem>>, vector<8x1x32xf32>,
    %138 = vector.extract_strided_slice %26 {offsets = [0, 7, 0], sizes = [4, 1, 34], strides = [1, 1, 1]} : vector<4x10x34xf32> to vector<4x1x34xf32>
    %139 = vector.shape_cast %138 : vector<4x1x34xf32> to vector<4x34xf32>
    %140 = vector.extract_strided_slice %139 {offsets = [0, 0], sizes = [4, 32], strides = [1, 1]} : vector<4x34xf32> to vector<4x32xf32>
    %cst_80 = arith.constant dense<0.000000e+00> : vector<8x32xf32>
    %141 = tpu.matmul %10, %140, %cst_80 {dimension_numbers = #tpu.dot_dimension_numbers<[1], [0], [0], [1], [0, 0, 1, 1], [], []>} : vector<8x4xf32>, vector<4x32xf32>, vector<8x32xf32> -> vector<8x32xf32>
    %142 = vector.extract_strided_slice %139 {offsets = [0, 1], sizes = [4, 32], strides = [1, 1]} : vector<4x34xf32> to vector<4x32xf32>
    %cst_81 = arith.constant dense<0.000000e+00> : vector<8x32xf32>
    %143 = tpu.matmul %12, %142, %cst_81 {dimension_numbers = #tpu.dot_dimension_numbers<[1], [0], [0], [1], [0, 0, 1, 1], [], []>} : vector<8x4xf32>, vector<4x32xf32>, vector<8x32xf32> -> vector<8x32xf32>
    %144 = arith.addf %141, %143 : vector<8x32xf32>
    %145 = vector.extract_strided_slice %139 {offsets = [0, 2], sizes = [4, 32], strides = [1, 1]} : vector<4x34xf32> to vector<4x32xf32>
    %cst_82 = arith.constant dense<0.000000e+00> : vector<8x32xf32>
    %146 = tpu.matmul %14, %145, %cst_82 {dimension_numbers = #tpu.dot_dimension_numbers<[1], [0], [0], [1], [0, 0, 1, 1], [], []>} : vector<8x4xf32>, vector<4x32xf32>, vector<8x32xf32> -> vector<8x32xf32>
    %147 = arith.addf %144, %146 : vector<8x32xf32>
    %c0_83 = arith.constant 0 : index
    %c6 = arith.constant 6 : index
    %c0_84 = arith.constant 0 : index
    %148 = vector.load %arg10[%c0_83, %c6, %c0_84] : memref<8x8x32xf32, #tpu.memory_space<vmem>>, vector<8x1x32xf32>
    %149 = vector.shape_cast %148 : vector<8x1x32xf32> to vector<8x32xf32>
    %150 = vector.shape_cast %147 : vector<8x32xf32> to vector<8x1x32xf32>
    tpu.vector_store %arg10[%c0_83, %c6, %c0_84], %150 {strides = array<i32>} : memref<8x8x32xf32, #tpu.memory_space<vmem>>, vector<8x1x32xf32>,
    %151 = vector.extract_strided_slice %26 {offsets = [0, 7, 0], sizes = [4, 1, 34], strides = [1, 1, 1]} : vector<4x10x34xf32> to vector<4x1x34xf32>
    %152 = vector.shape_cast %151 : vector<4x1x34xf32> to vector<4x34xf32>
    %153 = vector.extract_strided_slice %152 {offsets = [0, 0], sizes = [4, 32], strides = [1, 1]} : vector<4x34xf32> to vector<4x32xf32>
    %cst_85 = arith.constant dense<0.000000e+00> : vector<8x32xf32>
    %154 = tpu.matmul %4, %153, %cst_85 {dimension_numbers = #tpu.dot_dimension_numbers<[1], [0], [0], [1], [0, 0, 1, 1], [], []>} : vector<8x4xf32>, vector<4x32xf32>, vector<8x32xf32> -> vector<8x32xf32>
    %155 = vector.extract_strided_slice %152 {offsets = [0, 1], sizes = [4, 32], strides = [1, 1]} : vector<4x34xf32> to vector<4x32xf32>
    %cst_86 = arith.constant dense<0.000000e+00> : vector<8x32xf32>
    %156 = tpu.matmul %6, %155, %cst_86 {dimension_numbers = #tpu.dot_dimension_numbers<[1], [0], [0], [1], [0, 0, 1, 1], [], []>} : vector<8x4xf32>, vector<4x32xf32>, vector<8x32xf32> -> vector<8x32xf32>
    %157 = arith.addf %154, %156 : vector<8x32xf32>
    %158 = vector.extract_strided_slice %152 {offsets = [0, 2], sizes = [4, 32], strides = [1, 1]} : vector<4x34xf32> to vector<4x32xf32>
    %cst_87 = arith.constant dense<0.000000e+00> : vector<8x32xf32>
    %159 = tpu.matmul %8, %158, %cst_87 {dimension_numbers = #tpu.dot_dimension_numbers<[1], [0], [0], [1], [0, 0, 1, 1], [], []>} : vector<8x4xf32>, vector<4x32xf32>, vector<8x32xf32> -> vector<8x32xf32>
    %160 = arith.addf %157, %159 : vector<8x32xf32>
    %161 = vector.extract_strided_slice %26 {offsets = [0, 9, 0], sizes = [4, 1, 34], strides = [1, 1, 1]} : vector<4x10x34xf32> to vector<4x1x34xf32>
    %162 = vector.shape_cast %161 : vector<4x1x34xf32> to vector<4x34xf32>
    %163 = vector.extract_strided_slice %162 {offsets = [0, 0], sizes = [4, 32], strides = [1, 1]} : vector<4x34xf32> to vector<4x32xf32>
    %cst_88 = arith.constant dense<0.000000e+00> : vector<8x32xf32>
    %164 = tpu.matmul %16, %163, %cst_88 {dimension_numbers = #tpu.dot_dimension_numbers<[1], [0], [0], [1], [0, 0, 1, 1], [], []>} : vector<8x4xf32>, vector<4x32xf32>, vector<8x32xf32> -> vector<8x32xf32>
    %165 = arith.addf %160, %164 : vector<8x32xf32>
    %166 = vector.extract_strided_slice %162 {offsets = [0, 1], sizes = [4, 32], strides = [1, 1]} : vector<4x34xf32> to vector<4x32xf32>
    %cst_89 = arith.constant dense<0.000000e+00> : vector<8x32xf32>
    %167 = tpu.matmul %18, %166, %cst_89 {dimension_numbers = #tpu.dot_dimension_numbers<[1], [0], [0], [1], [0, 0, 1, 1], [], []>} : vector<8x4xf32>, vector<4x32xf32>, vector<8x32xf32> -> vector<8x32xf32>
    %168 = arith.addf %165, %167 : vector<8x32xf32>
    %169 = vector.extract_strided_slice %162 {offsets = [0, 2], sizes = [4, 32], strides = [1, 1]} : vector<4x34xf32> to vector<4x32xf32>
    %cst_90 = arith.constant dense<0.000000e+00> : vector<8x32xf32>
    %170 = tpu.matmul %20, %169, %cst_90 {dimension_numbers = #tpu.dot_dimension_numbers<[1], [0], [0], [1], [0, 0, 1, 1], [], []>} : vector<8x4xf32>, vector<4x32xf32>, vector<8x32xf32> -> vector<8x32xf32>
    %171 = arith.addf %168, %170 : vector<8x32xf32>
    %c0_91 = arith.constant 0 : index
    %c7 = arith.constant 7 : index
    %c0_92 = arith.constant 0 : index
    %172 = vector.load %arg10[%c0_91, %c7, %c0_92] : memref<8x8x32xf32, #tpu.memory_space<vmem>>, vector<8x1x32xf32>
    %173 = vector.shape_cast %172 : vector<8x1x32xf32> to vector<8x32xf32>
    %174 = vector.shape_cast %171 : vector<8x32xf32> to vector<8x1x32xf32>
    tpu.vector_store %arg10[%c0_91, %c7, %c0_92], %174 {strides = array<i32>} : memref<8x8x32xf32, #tpu.memory_space<vmem>>, vector<8x1x32xf32>,
    %c0_93 = arith.constant 0 : index
    %c0_94 = arith.constant 0 : index
    %c0_95 = arith.constant 0 : index
    %175 = vector.load %arg10[%c0_93, %c0_94, %c0_95] : memref<8x8x32xf32, #tpu.memory_space<vmem>>, vector<8x8x32xf32>
    %176 = vector.shape_cast %21 : vector<8x1xf32> to vector<8x1x1xf32>
    %177 = vector.broadcast %176 : vector<8x1x1xf32> to vector<8x8x32xf32>
    %178 = arith.addf %175, %177 : vector<8x8x32xf32>
    %c0_96 = arith.constant 0 : index
    %c0_97 = arith.constant 0 : index
    %179 = arith.index_cast %23 : i32 to index
    %c0_98 = arith.constant 0 : index
    %180 = vector.load %arg7[%c0_96, %c0_97, %179, %c0_98] : memref<1x8x32x32xf32, #tpu.memory_space<vmem>>, vector<1x8x8x32xf32>
    %181 = vector.shape_cast %180 : vector<1x8x8x32xf32> to vector<8x8x32xf32>
    %182 = vector.shape_cast %178 : vector<8x8x32xf32> to vector<1x8x8x32xf32>
    tpu.vector_store %arg7[%c0_96, %c0_97, %179, %c0_98], %182 {strides = array<i32>} : memref<1x8x32x32xf32, #tpu.memory_space<vmem>>, vector<1x8x8x32xf32>,
    %c0_99 = arith.constant 0 : index
    %c0_100 = arith.constant 0 : index
    %183 = vector.load %arg8[%c0_99, %c0_100] : memref<8x1xf32, #tpu.memory_space<vmem>>, vector<8x1xf32>
    %cst_101 = arith.constant dense<0.000000e+00> : vector<8x8xf32>
    %184 = vector.multi_reduction <add>, %178, %cst_101 [2] : vector<8x8x32xf32> to vector<8x8xf32>
    %cst_102 = arith.constant dense<0.000000e+00> : vector<8xf32>
    %185 = vector.multi_reduction <add>, %184, %cst_102 [1] : vector<8x8xf32> to vector<8xf32>
    %186 = vector.shape_cast %185 : vector<8xf32> to vector<8x1xf32>
    %187 = arith.addf %183, %186 : vector<8x1xf32>
    %c0_103 = arith.constant 0 : index
    %c0_104 = arith.constant 0 : index
    %188 = vector.load %arg8[%c0_103, %c0_104] : memref<8x1xf32, #tpu.memory_space<vmem>>, vector<8x1xf32>
    tpu.vector_store %arg8[%c0_103, %c0_104], %187 {strides = array<i32>} : memref<8x1xf32, #tpu.memory_space<vmem>>, vector<8x1xf32>,
    %c0_105 = arith.constant 0 : index
    %c0_106 = arith.constant 0 : index
    %189 = vector.load %arg9[%c0_105, %c0_106] : memref<8x1xf32, #tpu.memory_space<vmem>>, vector<8x1xf32>
    %190 = arith.mulf %178, %178 : vector<8x8x32xf32>
    %cst_107 = arith.constant dense<0.000000e+00> : vector<8x8xf32>
    %191 = vector.multi_reduction <add>, %190, %cst_107 [2] : vector<8x8x32xf32> to vector<8x8xf32>
    %cst_108 = arith.constant dense<0.000000e+00> : vector<8xf32>
    %192 = vector.multi_reduction <add>, %191, %cst_108 [1] : vector<8x8xf32> to vector<8xf32>
    %193 = vector.shape_cast %192 : vector<8xf32> to vector<8x1xf32>
    %194 = arith.addf %189, %193 : vector<8x1xf32>
    %c0_109 = arith.constant 0 : index
    %c0_110 = arith.constant 0 : index
    %195 = vector.load %arg9[%c0_109, %c0_110] : memref<8x1xf32, #tpu.memory_space<vmem>>, vector<8x1xf32>
    tpu.vector_store %arg9[%c0_109, %c0_110], %194 {strides = array<i32>} : memref<8x1xf32, #tpu.memory_space<vmem>>, vector<8x1xf32>,
    %c3_i32 = arith.constant 3 : i32
    %196 = arith.cmpi eq, %arg1, %c3_i32 : i32
    %197 = arith.extui %196 : i1 to i32
    %c0_i32_111 = arith.constant 0 : i32
    %198 = arith.cmpi ne, %197, %c0_i32_111 : i32
    scf.if %198 {
      %c0_112 = arith.constant 0 : index
      %c0_113 = arith.constant 0 : index
      %199 = vector.load %arg8[%c0_112, %c0_113] : memref<8x1xf32, #tpu.memory_space<vmem>>, vector<8x1xf32>
      %cst_114 = arith.constant 9.765625E-4 : f32
      %200 = vector.broadcast %cst_114 : f32 to vector<8x1xf32>
      %201 = arith.mulf %199, %200 : vector<8x1xf32>
      %c0_115 = arith.constant 0 : index
      %c0_116 = arith.constant 0 : index
      %202 = vector.load %arg9[%c0_115, %c0_116] : memref<8x1xf32, #tpu.memory_space<vmem>>, vector<8x1xf32>
      %cst_117 = arith.constant 9.765625E-4 : f32
      %203 = vector.broadcast %cst_117 : f32 to vector<8x1xf32>
      %204 = arith.mulf %202, %203 : vector<8x1xf32>
      %205 = arith.mulf %201, %201 : vector<8x1xf32>
      %206 = arith.subf %204, %205 : vector<8x1xf32>
      %cst_118 = arith.constant 9.99999974E-6 : f32
      %207 = vector.broadcast %cst_118 : f32 to vector<8x1xf32>
      %208 = arith.addf %206, %207 : vector<8x1xf32>
      %209 = math.rsqrt %208 : vector<8x1xf32>
      %c0_119 = arith.constant 0 : index
      %c0_120 = arith.constant 0 : index
      %210 = vector.load %arg5[%c0_119, %c0_120] : memref<8x1xf32, #tpu.memory_space<vmem>>, vector<8x1xf32>
      %211 = arith.mulf %209, %210 : vector<8x1xf32>
      %c0_121 = arith.constant 0 : index
      %c0_122 = arith.constant 0 : index
      %212 = vector.load %arg6[%c0_121, %c0_122] : memref<8x1xf32, #tpu.memory_space<vmem>>, vector<8x1xf32>
      %213 = arith.mulf %201, %211 : vector<8x1xf32>
      %214 = arith.subf %212, %213 : vector<8x1xf32>
      %215 = vector.shape_cast %211 : vector<8x1xf32> to vector<8x1x1xf32>
      %216 = vector.shape_cast %214 : vector<8x1xf32> to vector<8x1x1xf32>
      %c0_i32_123 = arith.constant 0 : i32
      %c4_i32 = arith.constant 4 : i32
      %217 = arith.addi %c0_i32_123, %c4_i32 : i32
      %c1_i32 = arith.constant 1 : i32
      scf.for %arg11 = %c0_i32_123 to %217 step %c1_i32  : i32 {
        %c8_i32_125 = arith.constant 8 : i32
        %218 = arith.muli %arg11, %c8_i32_125 : i32
        %219 = tpu.assume_multiple %218, 8 : i32
        %c0_126 = arith.constant 0 : index
        %c0_127 = arith.constant 0 : index
        %220 = arith.index_cast %219 : i32 to index
        %c0_128 = arith.constant 0 : index
        %221 = vector.load %arg7[%c0_126, %c0_127, %220, %c0_128] : memref<1x8x32x32xf32, #tpu.memory_space<vmem>>, vector<1x8x8x32xf32>
        %222 = vector.shape_cast %221 : vector<1x8x8x32xf32> to vector<8x8x32xf32>
        %223 = vector.broadcast %215 : vector<8x1x1xf32> to vector<8x8x32xf32>
        %224 = arith.mulf %222, %223 : vector<8x8x32xf32>
        %225 = vector.broadcast %216 : vector<8x1x1xf32> to vector<8x8x32xf32>
        %226 = arith.addf %224, %225 : vector<8x8x32xf32>
        %c0_129 = arith.constant 0 : index
        %c0_130 = arith.constant 0 : index
        %227 = arith.index_cast %219 : i32 to index
        %c0_131 = arith.constant 0 : index
        %228 = vector.load %arg7[%c0_129, %c0_130, %227, %c0_131] : memref<1x8x32x32xf32, #tpu.memory_space<vmem>>, vector<1x8x8x32xf32>
        %229 = vector.shape_cast %228 : vector<1x8x8x32xf32> to vector<8x8x32xf32>
        %230 = vector.shape_cast %226 : vector<8x8x32xf32> to vector<1x8x8x32xf32>
        tpu.vector_store %arg7[%c0_129, %c0_130, %227, %c0_131], %230 {strides = array<i32>} : memref<1x8x32x32xf32, #tpu.memory_space<vmem>>, vector<1x8x8x32xf32>,
      }
      %c4_i32_124 = arith.constant 4 : i32
    } else {
    }
    return
  }
  func.func @transform_0(%arg0: i32, %arg1: i32) -> (i32, i32, i32, i32) {
    %c0_i32 = arith.constant 0 : i32
    %c0_i32_0 = arith.constant 0 : i32
    %c0_i32_1 = arith.constant 0 : i32
    %c0_i32_2 = arith.constant 0 : i32
    return %arg0, %c0_i32, %c0_i32_0, %c0_i32_1 : i32, i32, i32, i32
  }
  func.func @transform_1(%arg0: i32, %arg1: i32) -> (i32, i32, i32, i32) {
    %c0_i32 = arith.constant 0 : i32
    %c0_i32_0 = arith.constant 0 : i32
    %c0_i32_1 = arith.constant 0 : i32
    %c0_i32_2 = arith.constant 0 : i32
    %c0_i32_3 = arith.constant 0 : i32
    return %c0_i32, %c0_i32_0, %c0_i32_1, %c0_i32_2 : i32, i32, i32, i32
  }
  func.func @transform_2(%arg0: i32, %arg1: i32) -> (i32, i32) {
    %c0_i32 = arith.constant 0 : i32
    %c0_i32_0 = arith.constant 0 : i32
    %c0_i32_1 = arith.constant 0 : i32
    return %c0_i32, %c0_i32_0 : i32, i32
  }
  func.func @transform_3(%arg0: i32, %arg1: i32) -> (i32, i32) {
    %c0_i32 = arith.constant 0 : i32
    %c0_i32_0 = arith.constant 0 : i32
    %c0_i32_1 = arith.constant 0 : i32
    return %c0_i32, %c0_i32_0 : i32, i32
  }
  func.func @transform_4(%arg0: i32, %arg1: i32) -> (i32, i32) {
    %c0_i32 = arith.constant 0 : i32
    %c0_i32_0 = arith.constant 0 : i32
    %c0_i32_1 = arith.constant 0 : i32
    return %c0_i32, %c0_i32_0 : i32, i32
  }
  func.func @transform_5(%arg0: i32, %arg1: i32) -> (i32, i32, i32, i32) {
    %c0_i32 = arith.constant 0 : i32
    %c0_i32_0 = arith.constant 0 : i32
    %c0_i32_1 = arith.constant 0 : i32
    %c0_i32_2 = arith.constant 0 : i32
    return %arg0, %c0_i32, %c0_i32_0, %c0_i32_1 : i32, i32, i32, i32
  }
}

</mosaic_0001>

<llo_original>
// kernel: tpu_custom_call.1
$region0: #{tpu_custom_call.1}
  #allocation0 [shape = 'u32[]', space=smem, size = 0x4, offset = 0x4, fixed_abs, tag = 'smem constant byte address 0x4 - core index']
  #allocation1 [shape = 'u32[72,128]{1,0:T(1,128)}', space=vmem, size = 0x9000, scoped, tag = 'internal scratch']
  #allocation2 [shape = 'f32[8,1]{1,0:T(8,128)}', space=vmem, size = 0x1000, scoped, tag = 'scratch operand']
  #allocation3 [shape = 'f32[8,1]{1,0:T(8,128)}', space=vmem, size = 0x1000, scoped, tag = 'scratch operand']
  #allocation4 [shape = 'f32[8,8,32]{2,1,0:T(8,128)}', space=vmem, size = 0x8000, scoped, tag = 'scratch operand']
  %s0 = inlined_call_operand.vmem [shape: f32[2,4,34,34], index: 0, kind: input, shape index: {}]
  %s1 = inlined_call_operand.vmem [shape: f32[3,3,8,4], index: 1, kind: input, shape index: {}]
  %s2 = inlined_call_operand.vmem [shape: f32[8,1], index: 2, kind: input, shape index: {}]
  %s3 = inlined_call_operand.vmem [shape: f32[8,1], index: 3, kind: input, shape index: {}]
  %s4 = inlined_call_operand.vmem [shape: f32[8,1], index: 4, kind: input, shape index: {}]
  %s5 = inlined_call_operand.hbm [shape: f32[2,8,32,32], index: 5, kind: output, shape index: {}]
  %s6 = sld [smem:[#allocation0]]
  $region68: #{tpu_custom_call.1} parent=0
    _
  %s8 = ssub.s32 1, %s6
  %s9 = scalar_select 0, %s8, %s6
  $region1: #{tpu_custom_call.1} parent=0
    #allocation5 [shape = 'u8[262144]{0}', space=vmem, size = 0x40000, scoped, tag = 'output window, operand 0']
    #allocation6 [shape = 's32[2]{0}', space=sflag, size = 0x8, scoped, tag = 'scoped memory for tpu_custom_call.1']
    %10 = vsyncpa [#allocation6], 0
    %s11 = scalar_lea.sflag [#allocation6], 1
    %12 = vsyncpa %s11, 0
    loop: start=0, step=1, limit=10
    $region2: #{tpu_custom_call.1} parent=1 // loop_pre_header
      _
    $region3: #{tpu_custom_call.1} parent=1 // loop_header
      %s14 = sphi 0, %s18
      %p15 = scmp.ge.s32.totalorder %s14, 10
      %s21 = sphi 0, %s33
      %s22 = sphi 0, %s29
      %s23 = sphi 0, %s21
      %s24 = sphi 0, %s22
      %s25 = sphi 0, %s23
      %s26 = sphi 0, %s24
      %s36 = sphi 0, %s38
      %s39 = sphi 0, %s36
      %s40 = sphi 0, %s39
      %s56 = sphi 0, %s40
      %s60 = sphi 0, %s60
      %s62 = sphi 0, %s60
      %s63 = sphi 0, %s62
      %s77 = sphi 0, %s63
      %s81 = sphi 0, %s81
      %s83 = sphi 0, %s81
      %s84 = sphi 0, %s83
      %s98 = sphi 0, %s84
      %s102 = sphi 0, %s102
      %s104 = sphi 0, %s102
      %s105 = sphi 0, %s104
      %s119 = sphi 0, %s105
      %s123 = sphi 0, %s123
      %s125 = sphi 0, %s123
      %s126 = sphi 0, %s125
      %s140 = sphi 0, %s126
      %s146 = sphi 0, %s148
      %s149 = sphi 0, %s146
      %s150 = sphi 0, %s149
      %s166 = sphi 0, %s150
    $region4: #{tpu_custom_call.1} parent=1 // loop_header_branch
      %17 = sbr.rel (%p15) target = $region8
    $region5: #{tpu_custom_call.1} parent=1 // loop_body
      %s19 = ssub.s32 %s14, 1
      %s20 = ssub.s32 %s14, 2
      %s27 = sadd.s32 1, %s22
      %p28 = scmp.ge.s32.totalorder %s27, 4
      %s29 = scalar_select %p28, 0, %s27
      %s30 = sadd.s32 1, %s21
      %s31 = scalar_select %p28, %s30, %s21
      %p32 = scmp.ge.s32.totalorder %s31, 2
      %s33 = scalar_select %p32, 0, %s31
      %s34 = ssub.s32 %s21, %s33
      %p35 = scmp.eq.s32.totalorder %s34, 0
      %s37 = sadd.s32 %s36, 1
      %s38 = scalar_select %p35, %s36, %s37
      %p41 = pneg %p35
      %p42 = scmp.eq.s32.totalorder %s14, 7
      %p43 = por %p41, %p42
      %p44 = scmp.ne.s32.totalorder %s36, %s39
      %p45 = scmp.eq.s32.totalorder %s14, 0
      %p46 = por %p44, %p45
      %p47 = scmp.ne.s32.totalorder %s36, %s39
      %p48 = scmp.eq.s32.totalorder %s19, 7
      %p49 = por %p47, %p48
      %p50 = scmp.ne.s32.totalorder %s39, %s40
      %p51 = scmp.eq.s32.totalorder %s19, 0
      %p52 = por %p50, %p51
      %p53 = scmp.ne.s32.totalorder %s39, %s40
      %p54 = scmp.eq.s32.totalorder %s20, 7
      %p55 = por %p53, %p54
      %p57 = scmp.ne.s32.totalorder %s40, %s56
      %p58 = scmp.eq.s32.totalorder %s20, 0
      %p59 = por %p57, %p58
      %s61 = sadd.s32 %s60, 1
      %p64 = scmp.eq.s32.totalorder %s14, 7
      %p65 = scmp.ne.s32.totalorder %s60, %s62
      %p66 = scmp.eq.s32.totalorder %s14, 0
      %p67 = por %p65, %p66
      %p68 = scmp.ne.s32.totalorder %s60, %s62
      %p69 = scmp.eq.s32.totalorder %s19, 7
      %p70 = por %p68, %p69
      %p71 = scmp.ne.s32.totalorder %s62, %s63
      %p72 = scmp.eq.s32.totalorder %s19, 0
      %p73 = por %p71, %p72
      %p74 = scmp.ne.s32.totalorder %s62, %s63
      %p75 = scmp.eq.s32.totalorder %s20, 7
      %p76 = por %p74, %p75
      %p78 = scmp.ne.s32.totalorder %s63, %s77
      %p79 = scmp.eq.s32.totalorder %s20, 0
      %p80 = por %p78, %p79
      %s82 = sadd.s32 %s81, 1
      %p85 = scmp.eq.s32.totalorder %s14, 7
      %p86 = scmp.ne.s32.totalorder %s81, %s83
      %p87 = scmp.eq.s32.totalorder %s14, 0
      %p88 = por %p86, %p87
      %p89 = scmp.ne.s32.totalorder %s81, %s83
      %p90 = scmp.eq.s32.totalorder %s19, 7
      %p91 = por %p89, %p90
      %p92 = scmp.ne.s32.totalorder %s83, %s84
      %p93 = scmp.eq.s32.totalorder %s19, 0
      %p94 = por %p92, %p93
      %p95 = scmp.ne.s32.totalorder %s83, %s84
      %p96 = scmp.eq.s32.totalorder %s20, 7
      %p97 = por %p95, %p96
      %p99 = scmp.ne.s32.totalorder %s84, %s98
      %p100 = scmp.eq.s32.totalorder %s20, 0
      %p101 = por %p99, %p100
      %s103 = sadd.s32 %s102, 1
      %p106 = scmp.eq.s32.totalorder %s14, 7
      %p107 = scmp.ne.s32.totalorder %s102, %s104
      %p108 = scmp.eq.s32.totalorder %s14, 0
      %p109 = por %p107, %p108
      %p110 = scmp.ne.s32.totalorder %s102, %s104
      %p111 = scmp.eq.s32.totalorder %s19, 7
      %p112 = por %p110, %p111
      %p113 = scmp.ne.s32.totalorder %s104, %s105
      %p114 = scmp.eq.s32.totalorder %s19, 0
      %p115 = por %p113, %p114
      %p116 = scmp.ne.s32.totalorder %s104, %s105
      %p117 = scmp.eq.s32.totalorder %s20, 7
      %p118 = por %p116, %p117
      %p120 = scmp.ne.s32.totalorder %s105, %s119
      %p121 = scmp.eq.s32.totalorder %s20, 0
      %p122 = por %p120, %p121
      %s124 = sadd.s32 %s123, 1
      %p127 = scmp.eq.s32.totalorder %s14, 7
      %p128 = scmp.ne.s32.totalorder %s123, %s125
      %p129 = scmp.eq.s32.totalorder %s14, 0
      %p130 = por %p128, %p129
      %p131 = scmp.ne.s32.totalorder %s123, %s125
      %p132 = scmp.eq.s32.totalorder %s19, 7
      %p133 = por %p131, %p132
      %p134 = scmp.ne.s32.totalorder %s125, %s126
      %p135 = scmp.eq.s32.totalorder %s19, 0
      %p136 = por %p134, %p135
      %p137 = scmp.ne.s32.totalorder %s125, %s126
      %p138 = scmp.eq.s32.totalorder %s20, 7
      %p139 = por %p137, %p138
      %p141 = scmp.ne.s32.totalorder %s126, %s140
      %p142 = scmp.eq.s32.totalorder %s20, 0
      %p143 = por %p141, %p142
      %s144 = ssub.s32 %s21, %s33
      %p145 = scmp.eq.s32.totalorder %s144, 0
      %s147 = sadd.s32 %s146, 1
      %s148 = scalar_select %p145, %s146, %s147
      %p151 = pneg %p145
      %p152 = scmp.eq.s32.totalorder %s14, 7
      %p153 = por %p151, %p152
      %p154 = scmp.ne.s32.totalorder %s146, %s149
      %p155 = scmp.eq.s32.totalorder %s14, 0
      %p156 = por %p154, %p155
      %p157 = scmp.ne.s32.totalorder %s146, %s149
      %p158 = scmp.eq.s32.totalorder %s19, 7
      %p159 = por %p157, %p158
      %p160 = scmp.ne.s32.totalorder %s149, %s150
      %p161 = scmp.eq.s32.totalorder %s19, 0
      %p162 = por %p160, %p161
      %p163 = scmp.ne.s32.totalorder %s149, %s150
      %p164 = scmp.eq.s32.totalorder %s20, 7
      %p165 = por %p163, %p164
      %p167 = scmp.ne.s32.totalorder %s150, %s166
      %p168 = scmp.eq.s32.totalorder %s20, 0
      %p169 = por %p167, %p168
      %p170 = scmp.le.s32.totalorder 1, %s14
      %p171 = scmp.lt.s32.totalorder %s14, 9
      %p172 = pnand %p170, %p171
      %p173 = pneg %p172
      // Predicated region
      $region9: #{tpu_custom_call.1} parent=5 // pred_check
        _
      $region10: #{tpu_custom_call.1} parent=5 // pred_check_branch
        %175 = sbr.rel (%p172) target = $region12
      $region11: #{tpu_custom_call.1} parent=5 // pred_region
        %s176 = ssub.s32 %s14, 1
        // Predicated region
        $region13: #{tpu_custom_call.1} parent=11 // pred_check
          %p177 = pneg %p73
        $region14: #{tpu_custom_call.1} parent=11 // pred_check_branch
          %179 = sbr.rel (%p177) target = $region16
        $region15: #{tpu_custom_call.1} parent=11 // pred_region
          _
        $region16: #{tpu_custom_call.1} parent=11 // pred_fallthru
          _
        // Predicated region
        $region17: #{tpu_custom_call.1} parent=11 // pred_check
          %p180 = pneg %p94
        $region18: #{tpu_custom_call.1} parent=11 // pred_check_branch
          %182 = sbr.rel (%p180) target = $region20
        $region19: #{tpu_custom_call.1} parent=11 // pred_region
          _
        $region20: #{tpu_custom_call.1} parent=11 // pred_fallthru
          _
        // Predicated region
        $region21: #{tpu_custom_call.1} parent=11 // pred_check
          %p183 = pneg %p115
        $region22: #{tpu_custom_call.1} parent=11 // pred_check_branch
          %185 = sbr.rel (%p183) target = $region24
        $region23: #{tpu_custom_call.1} parent=11 // pred_region
          _
        $region24: #{tpu_custom_call.1} parent=11 // pred_fallthru
          _
        // Predicated region
        $region25: #{tpu_custom_call.1} parent=11 // pred_check
          %p186 = pneg %p136
        $region26: #{tpu_custom_call.1} parent=11 // pred_check_branch
          %188 = sbr.rel (%p186) target = $region28
        $region27: #{tpu_custom_call.1} parent=11 // pred_region
          _
        $region28: #{tpu_custom_call.1} parent=11 // pred_fallthru
          _
      $region12: #{tpu_custom_call.1} parent=5 // pred_fallthru
        _
      %p189 = scmp.lt.s32.totalorder %s14, 8
      // Predicated region
      $region29: #{tpu_custom_call.1} parent=5 // pred_check
        %p190 = pneg %p189
      $region30: #{tpu_custom_call.1} parent=5 // pred_check_branch
        %192 = sbr.rel (%p190) target = $region32
      $region31: #{tpu_custom_call.1} parent=5 // pred_region
        // Predicated region
        $region33: #{tpu_custom_call.1} parent=31 // pred_check
          %p193 = pneg %p46
        $region34: #{tpu_custom_call.1} parent=31 // pred_check_branch
          %195 = sbr.rel (%p193) target = $region36
        $region35: #{tpu_custom_call.1} parent=31 // pred_region
          %p196 = scmp.lt.s32.totalorder %s21, 1
          %s197 = scalar_select %p196, %s21, 1
          %s198 = smul.addr %s197, 20
          %s199 = smul.addr %s198, 8
          %s200 = scalar_lea.vmem %s0, %s199
        $region36: #{tpu_custom_call.1} parent=31 // pred_fallthru
          _
      $region32: #{tpu_custom_call.1} parent=5 // pred_fallthru
        _
      %p201 = scmp.le.s32.totalorder 1, %s14
      %p202 = scmp.lt.s32.totalorder %s14, 9
      %p203 = pnand %p201, %p202
      %p204 = pneg %p203
      // Predicated region
      $region37: #{tpu_custom_call.1} parent=5 // pred_check
        _
      $region38: #{tpu_custom_call.1} parent=5 // pred_check_branch
        %206 = sbr.rel (%p203) target = $region40
      $region39: #{tpu_custom_call.1} parent=5 // pred_region
        %s207 = ssub.s32 %s14, 1
        %p208 = scmp.lt.s32.totalorder %s23, 1
        %s209 = scalar_select %p208, %s23, 1
        %s210 = smul.addr %s209, 20
        %s211 = smul.addr %s210, 8
        %s212 = scalar_lea.vmem %s0, %s211
        %p213 = pneg %p52
        %p214 = pneg %p49
        %p215 = pneg %p73
        %p216 = pneg %p70
        %p217 = pneg %p94
        %p218 = pneg %p91
        %p219 = pneg %p115
        %p220 = pneg %p112
        %p221 = pneg %p136
        %p222 = pneg %p133
        %p223 = pneg %p162
        %p224 = pneg %p159
        %s225 = sand.u32 %s149, 1
        %s226 = scalar_lea.sflag [#allocation6], %s225
        %s227 = sand.u32 %s149, 1
        %s228 = smul.addr %s227, 256
        %s229 = scalar_lea.vmem [#allocation5], %s228
        %p230 = scmp.lt.s32.totalorder %s23, 1
        %s231 = scalar_select %p230, %s23, 1
        %s232 = smul.addr %s231, 20
        %s233 = smul.addr %s232, 8
        %s234 = scalar_lea.vmem %s0, %s233
        %p235 = scmp.eq.s32.totalorder %s24, 0
        // Predicated region
        $region41: #{tpu_custom_call.1} parent=39 // pred_check
          %p236 = pneg %p235
        $region42: #{tpu_custom_call.1} parent=39 // pred_check_branch
          %238 = sbr.rel (%p236) target = $region44
        $region43: #{tpu_custom_call.1} parent=39 // pred_region
          %vm239 = vcmask 7168
          %240 = vst.msk [vmem:[#allocation2] sm:$0xff] %vm239, 0.0
          %241 = vst.msk [vmem:[#allocation3] sm:$0xff] %vm239, 0.0
        $region44: #{tpu_custom_call.1} parent=39 // pred_fallthru
          _
        %v242 = vld [vmem:[%s1] sm:$0xff]
        %s243 = scalar_lea.vmem %s1, 8
        %v244 = vld [vmem:[%s243] sm:$0xff]
        %s245 = scalar_lea.vmem %s1, 16
        %v246 = vld [vmem:[%s245] sm:$0xff]
        %s247 = scalar_lea.vmem %s1, 24
        %v248 = vld [vmem:[%s247] sm:$0xff]
        %s249 = scalar_lea.vmem %s1, 32
        %v250 = vld [vmem:[%s249] sm:$0xff]
        %s251 = scalar_lea.vmem %s1, 40
        %v252 = vld [vmem:[%s251] sm:$0xff]
        %s253 = scalar_lea.vmem %s1, 48
        %v254 = vld [vmem:[%s253] sm:$0xff]
        %s255 = scalar_lea.vmem %s1, 56
        %v256 = vld [vmem:[%s255] sm:$0xff]
        %s257 = scalar_lea.vmem %s1, 64
        %v258 = vld [vmem:[%s257] sm:$0xff]
        %v259 = vld [vmem:[%s2] sm:$0xff]
        %s260 = smul.u32 %s24, 8
        %s261 = scalar_lea.vmem %s234, %s260
        %v262 = vld [vmem:[%s261] sm:$0xff]
        %v263 = vld [vmem:[%s261 + $0x8] sm:$0x3]
        %v264 = vld [vmem:[%s261 + $0x28] sm:$0xff]
        %v265 = vld [vmem:[%s261 + $0x30] sm:$0x3]
        %v266 = vld [vmem:[%s261 + $0x50] sm:$0xff]
        %v267 = vld [vmem:[%s261 + $0x58] sm:$0x3]
        %v268 = vld [vmem:[%s261 + $0x78] sm:$0xff]
        %v269 = vld [vmem:[%s261 + $0x80] sm:$0x3]
        %v274 = vrot.slane %v262, 1
        %vm275 = vcmask 1041409
        %v276 = vsel %vm275, %v264, %v274
        %v277 = vrot.slane %v266, 7
        %vm278 = vcmask 1042434
        %v279 = vsel %vm278, %v277, %v276
        %v280 = vrot.slane %v268, 6
        %vm281 = vcmask 1043459
        %v282 = vsel %vm281, %v280, %v279
        %283 = vrot.lane.b32.xlu0 %v282, 127
        %v284 = vpop.permute.xlu0 %283
        %vm285 = vcmask 31744
        %v287 = vsel %vm285, %v250, 0
        %vm289 = vcmask 1043456
        %v290 = vsel %vm289, %v284, 0
        %292 = vmatpush.msra.mxu0 0.0
        %293 = vmatpush.msra.mxu0 0.0
        %294 = vmatpush.msra.mxu0 0.0
        %295 = vmatpush.msra.mxu0 0.0
        %296 = vmatpush.msra.mxu0 0.0
        %297 = vmatpush.msra.mxu0 0.0
        %298 = vmatpush.msra.mxu0 0.0
        %299 = vmatpush.msra.mxu0 0.0
        %300 = vmatpush.msra.mxu0 0.0
        %301 = vmatpush.msra.mxu0 0.0
        %302 = vmatpush.msra.mxu0 0.0
        %303 = vmatpush.msra.mxu0 0.0
        %304 = vmatpush.msra.mxu0 0.0
        %305 = vmatpush.msra.mxu0 0.0
        %306 = vmatpush.msra.mxu0 0.0
        %307 = vmatpush.msra.mxu0 %v290
        %308 = vmatmul.f32.gmra.mxu0 %v287
        %v309 = vpop.f32.mrf.mxu0
        %v310 = vadd.f32 0.0, %v309
        %311 = vdwg.mxu0
        %v313 = vsel %vm285, %v248, 0
        %v315 = vsel %vm289, %v282, 0
        %317 = vmatpush.msra.mxu0 0.0
        %318 = vmatpush.msra.mxu0 0.0
        %319 = vmatpush.msra.mxu0 0.0
        %320 = vmatpush.msra.mxu0 0.0
        %321 = vmatpush.msra.mxu0 0.0
        %322 = vmatpush.msra.mxu0 0.0
        %323 = vmatpush.msra.mxu0 0.0
        %324 = vmatpush.msra.mxu0 0.0
        %325 = vmatpush.msra.mxu0 0.0
        %326 = vmatpush.msra.mxu0 0.0
        %327 = vmatpush.msra.mxu0 0.0
        %328 = vmatpush.msra.mxu0 0.0
        %329 = vmatpush.msra.mxu0 0.0
        %330 = vmatpush.msra.mxu0 0.0
        %331 = vmatpush.msra.mxu0 0.0
        %332 = vmatpush.msra.mxu0 %v315
        %333 = vmatmul.f32.gmra.mxu0 %v313
        %v334 = vpop.f32.mrf.mxu0
        %v335 = vadd.f32 %v310, %v334
        %336 = vdwg.mxu0
        %337 = vrot.lane.b32.xlu0 %v282, 126
        %v338 = vpop.permute.xlu0 %337
        %v340 = vsel %vm285, %v252, 0
        %v342 = vsel %vm289, %v338, 0
        %344 = vmatpush.msra.mxu0 0.0
        %345 = vmatpush.msra.mxu0 0.0
        %346 = vmatpush.msra.mxu0 0.0
        %347 = vmatpush.msra.mxu0 0.0
        %348 = vmatpush.msra.mxu0 0.0
        %349 = vmatpush.msra.mxu0 0.0
        %350 = vmatpush.msra.mxu0 0.0
        %351 = vmatpush.msra.mxu0 0.0
        %352 = vmatpush.msra.mxu0 0.0
        %353 = vmatpush.msra.mxu0 0.0
        %354 = vmatpush.msra.mxu0 0.0
        %355 = vmatpush.msra.mxu0 0.0
        %356 = vmatpush.msra.mxu0 0.0
        %357 = vmatpush.msra.mxu0 0.0
        %358 = vmatpush.msra.mxu0 0.0
        %359 = vmatpush.msra.mxu0 %v342
        %360 = vmatmul.f32.gmra.mxu0 %v340
        %v361 = vpop.f32.mrf.mxu0
        %v362 = vadd.f32 0.0, %v361
        %363 = vdwg.mxu0
        %v364 = vadd.f32 %v335, %v362
        %v366 = vrot.slane %v364, 1
        %v367 = vrot.slane %v364, 2
        %v368 = vrot.slane %v364, 3
        %v369 = vrot.slane %v364, 4
        %v370 = vrot.slane %v364, 5
        %v371 = vrot.slane %v364, 6
        %v372 = vrot.slane %v364, 7
        %vm380 = vcmask 253952
        %381 = vst.msk [vmem:[#allocation4] sm:$0x1] %vm380, %v364
        %382 = vst.msk [vmem:[#allocation4 + $0x8] sm:$0x1] %vm380, %v366
        %383 = vst.msk [vmem:[#allocation4 + $0x10] sm:$0x1] %vm380, %v367
        %384 = vst.msk [vmem:[#allocation4 + $0x18] sm:$0x1] %vm380, %v368
        %385 = vst.msk [vmem:[#allocation4 + $0x20] sm:$0x1] %vm380, %v369
        %386 = vst.msk [vmem:[#allocation4 + $0x28] sm:$0x1] %vm380, %v370
        %387 = vst.msk [vmem:[#allocation4 + $0x30] sm:$0x1] %vm380, %v371
        %388 = vst.msk [vmem:[#allocation4 + $0x38] sm:$0x1] %vm380, %v372
        %v390 = vsel %vm285, %v244, 0
        %392 = vmatpush.msra.mxu0 0.0
        %393 = vmatpush.msra.mxu0 0.0
        %394 = vmatpush.msra.mxu0 0.0
        %395 = vmatpush.msra.mxu0 0.0
        %396 = vmatpush.msra.mxu0 0.0
        %397 = vmatpush.msra.mxu0 0.0
        %398 = vmatpush.msra.mxu0 0.0
        %399 = vmatpush.msra.mxu0 0.0
        %400 = vmatpush.msra.mxu0 0.0
        %401 = vmatpush.msra.mxu0 0.0
        %402 = vmatpush.msra.mxu0 0.0
        %403 = vmatpush.msra.mxu0 0.0
        %404 = vmatpush.msra.mxu0 0.0
        %405 = vmatpush.msra.mxu0 0.0
        %406 = vmatpush.msra.mxu0 0.0
        %407 = vmatpush.msra.mxu0 %v290
        %408 = vmatmul.f32.gmra.mxu0 %v390
        %v409 = vpop.f32.mrf.mxu0
        %v410 = vadd.f32 0.0, %v409
        %411 = vdwg.mxu0
        %v413 = vsel %vm285, %v242, 0
        %415 = vmatpush.msra.mxu0 0.0
        %416 = vmatpush.msra.mxu0 0.0
        %417 = vmatpush.msra.mxu0 0.0
        %418 = vmatpush.msra.mxu0 0.0
        %419 = vmatpush.msra.mxu0 0.0
        %420 = vmatpush.msra.mxu0 0.0
        %421 = vmatpush.msra.mxu0 0.0
        %422 = vmatpush.msra.mxu0 0.0
        %423 = vmatpush.msra.mxu0 0.0
        %424 = vmatpush.msra.mxu0 0.0
        %425 = vmatpush.msra.mxu0 0.0
        %426 = vmatpush.msra.mxu0 0.0
        %427 = vmatpush.msra.mxu0 0.0
        %428 = vmatpush.msra.mxu0 0.0
        %429 = vmatpush.msra.mxu0 0.0
        %430 = vmatpush.msra.mxu0 %v315
        %431 = vmatmul.f32.gmra.mxu0 %v413
        %v432 = vpop.f32.mrf.mxu0
        %v433 = vadd.f32 %v410, %v432
        %434 = vdwg.mxu0
        %v436 = vsel %vm285, %v246, 0
        %438 = vmatpush.msra.mxu0 0.0
        %439 = vmatpush.msra.mxu0 0.0
        %440 = vmatpush.msra.mxu0 0.0
        %441 = vmatpush.msra.mxu0 0.0
        %442 = vmatpush.msra.mxu0 0.0
        %443 = vmatpush.msra.mxu0 0.0
        %444 = vmatpush.msra.mxu0 0.0
        %445 = vmatpush.msra.mxu0 0.0
        %446 = vmatpush.msra.mxu0 0.0
        %447 = vmatpush.msra.mxu0 0.0
        %448 = vmatpush.msra.mxu0 0.0
        %449 = vmatpush.msra.mxu0 0.0
        %450 = vmatpush.msra.mxu0 0.0
        %451 = vmatpush.msra.mxu0 0.0
        %452 = vmatpush.msra.mxu0 0.0
        %453 = vmatpush.msra.mxu0 %v342
        %454 = vmatmul.f32.gmra.mxu0 %v436
        %v455 = vpop.f32.mrf.mxu0
        %v456 = vadd.f32 0.0, %v455
        %457 = vdwg.mxu0
        %v458 = vadd.f32 %v433, %v456
        %v459 = vrot.slane %v262, 3
        %v460 = vrot.slane %v264, 2
        %v461 = vsel %vm275, %v460, %v459
        %v462 = vrot.slane %v266, 1
        %v463 = vsel %vm278, %v462, %v461
        %v464 = vsel %vm281, %v268, %v463
        %v466 = vsel %vm285, %v254, 0
        %v468 = vsel %vm289, %v464, 0
        %470 = vmatpush.msra.mxu0 0.0
        %471 = vmatpush.msra.mxu0 0.0
        %472 = vmatpush.msra.mxu0 0.0
        %473 = vmatpush.msra.mxu0 0.0
        %474 = vmatpush.msra.mxu0 0.0
        %475 = vmatpush.msra.mxu0 0.0
        %476 = vmatpush.msra.mxu0 0.0
        %477 = vmatpush.msra.mxu0 0.0
        %478 = vmatpush.msra.mxu0 0.0
        %479 = vmatpush.msra.mxu0 0.0
        %480 = vmatpush.msra.mxu0 0.0
        %481 = vmatpush.msra.mxu0 0.0
        %482 = vmatpush.msra.mxu0 0.0
        %483 = vmatpush.msra.mxu0 0.0
        %484 = vmatpush.msra.mxu0 0.0
        %485 = vmatpush.msra.mxu0 %v468
        %486 = vmatmul.f32.gmra.mxu0 %v466
        %v487 = vpop.f32.mrf.mxu0
        %v488 = vadd.f32 0.0, %v487
        %489 = vdwg.mxu0
        %v490 = vadd.f32 %v458, %v488
        %491 = vrot.lane.b32.xlu0 %v464, 127
        %v492 = vpop.permute.xlu0 %491
        %v494 = vsel %vm285, %v256, 0
        %v496 = vsel %vm289, %v492, 0
        %498 = vmatpush.msra.mxu0 0.0
        %499 = vmatpush.msra.mxu0 0.0
        %500 = vmatpush.msra.mxu0 0.0
        %501 = vmatpush.msra.mxu0 0.0
        %502 = vmatpush.msra.mxu0 0.0
        %503 = vmatpush.msra.mxu0 0.0
        %504 = vmatpush.msra.mxu0 0.0
        %505 = vmatpush.msra.mxu0 0.0
        %506 = vmatpush.msra.mxu0 0.0
        %507 = vmatpush.msra.mxu0 0.0
        %508 = vmatpush.msra.mxu0 0.0
        %509 = vmatpush.msra.mxu0 0.0
        %510 = vmatpush.msra.mxu0 0.0
        %511 = vmatpush.msra.mxu0 0.0
        %512 = vmatpush.msra.mxu0 0.0
        %513 = vmatpush.msra.mxu0 %v496
        %514 = vmatmul.f32.gmra.mxu0 %v494
        %v515 = vpop.f32.mrf.mxu0
        %v516 = vadd.f32 0.0, %v515
        %517 = vdwg.mxu0
        %v518 = vadd.f32 %v490, %v516
        %519 = vrot.lane.b32.xlu0 %v464, 126
        %v520 = vpop.permute.xlu0 %519
        %v522 = vsel %vm285, %v258, 0
        %v524 = vsel %vm289, %v520, 0
        %526 = vmatpush.msra.mxu0 0.0
        %527 = vmatpush.msra.mxu0 0.0
        %528 = vmatpush.msra.mxu0 0.0
        %529 = vmatpush.msra.mxu0 0.0
        %530 = vmatpush.msra.mxu0 0.0
        %531 = vmatpush.msra.mxu0 0.0
        %532 = vmatpush.msra.mxu0 0.0
        %533 = vmatpush.msra.mxu0 0.0
        %534 = vmatpush.msra.mxu0 0.0
        %535 = vmatpush.msra.mxu0 0.0
        %536 = vmatpush.msra.mxu0 0.0
        %537 = vmatpush.msra.mxu0 0.0
        %538 = vmatpush.msra.mxu0 0.0
        %539 = vmatpush.msra.mxu0 0.0
        %540 = vmatpush.msra.mxu0 0.0
        %541 = vmatpush.msra.mxu0 %v524
        %542 = vmatmul.f32.gmra.mxu0 %v522
        %v543 = vpop.f32.mrf.mxu0
        %v544 = vadd.f32 0.0, %v543
        %545 = vdwg.mxu0
        %v546 = vadd.f32 %v518, %v544
        %v548 = vrot.slane %v546, 1
        %v549 = vrot.slane %v546, 2
        %v550 = vrot.slane %v546, 3
        %v551 = vrot.slane %v546, 4
        %v552 = vrot.slane %v546, 5
        %v553 = vrot.slane %v546, 6
        %v554 = vrot.slane %v546, 7
        %562 = vst.msk [vmem:[#allocation4 + $0x1] sm:$0x1] %vm380, %v546
        %563 = vst.msk [vmem:[#allocation4 + $0x9] sm:$0x1] %vm380, %v548
        %564 = vst.msk [vmem:[#allocation4 + $0x11] sm:$0x1] %vm380, %v549
        %565 = vst.msk [vmem:[#allocation4 + $0x19] sm:$0x1] %vm380, %v550
        %566 = vst.msk [vmem:[#allocation4 + $0x21] sm:$0x1] %vm380, %v551
        %567 = vst.msk [vmem:[#allocation4 + $0x29] sm:$0x1] %vm380, %v552
        %568 = vst.msk [vmem:[#allocation4 + $0x31] sm:$0x1] %vm380, %v553
        %569 = vst.msk [vmem:[#allocation4 + $0x39] sm:$0x1] %vm380, %v554
        %570 = vmatpush.msra.mxu0 0.0
        %571 = vmatpush.msra.mxu0 0.0
        %572 = vmatpush.msra.mxu0 0.0
        %573 = vmatpush.msra.mxu0 0.0
        %574 = vmatpush.msra.mxu0 0.0
        %575 = vmatpush.msra.mxu0 0.0
        %576 = vmatpush.msra.mxu0 0.0
        %577 = vmatpush.msra.mxu0 0.0
        %578 = vmatpush.msra.mxu0 0.0
        %579 = vmatpush.msra.mxu0 0.0
        %580 = vmatpush.msra.mxu0 0.0
        %581 = vmatpush.msra.mxu0 0.0
        %582 = vmatpush.msra.mxu0 0.0
        %583 = vmatpush.msra.mxu0 0.0
        %584 = vmatpush.msra.mxu0 0.0
        %585 = vmatpush.msra.mxu0 %v496
        %586 = vmatmul.f32.gmra.mxu0 %v287
        %v587 = vpop.f32.mrf.mxu0
        %v588 = vadd.f32 0.0, %v587
        %589 = vdwg.mxu0
        %590 = vmatpush.msra.mxu0 0.0
        %591 = vmatpush.msra.mxu0 0.0
        %592 = vmatpush.msra.mxu0 0.0
        %593 = vmatpush.msra.mxu0 0.0
        %594 = vmatpush.msra.mxu0 0.0
        %595 = vmatpush.msra.mxu0 0.0
        %596 = vmatpush.msra.mxu0 0.0
        %597 = vmatpush.msra.mxu0 0.0
        %598 = vmatpush.msra.mxu0 0.0
        %599 = vmatpush.msra.mxu0 0.0
        %600 = vmatpush.msra.mxu0 0.0
        %601 = vmatpush.msra.mxu0 0.0
        %602 = vmatpush.msra.mxu0 0.0
        %603 = vmatpush.msra.mxu0 0.0
        %604 = vmatpush.msra.mxu0 0.0
        %605 = vmatpush.msra.mxu0 %v468
        %606 = vmatmul.f32.gmra.mxu0 %v313
        %v607 = vpop.f32.mrf.mxu0
        %v608 = vadd.f32 %v588, %v607
        %609 = vdwg.mxu0
        %610 = vmatpush.msra.mxu0 0.0
        %611 = vmatpush.msra.mxu0 0.0
        %612 = vmatpush.msra.mxu0 0.0
        %613 = vmatpush.msra.mxu0 0.0
        %614 = vmatpush.msra.mxu0 0.0
        %615 = vmatpush.msra.mxu0 0.0
        %616 = vmatpush.msra.mxu0 0.0
        %617 = vmatpush.msra.mxu0 0.0
        %618 = vmatpush.msra.mxu0 0.0
        %619 = vmatpush.msra.mxu0 0.0
        %620 = vmatpush.msra.mxu0 0.0
        %621 = vmatpush.msra.mxu0 0.0
        %622 = vmatpush.msra.mxu0 0.0
        %623 = vmatpush.msra.mxu0 0.0
        %624 = vmatpush.msra.mxu0 0.0
        %625 = vmatpush.msra.mxu0 %v524
        %626 = vmatmul.f32.gmra.mxu0 %v340
        %v627 = vpop.f32.mrf.mxu0
        %v628 = vadd.f32 0.0, %v627
        %629 = vdwg.mxu0
        %v630 = vadd.f32 %v608, %v628
        %v632 = vrot.slane %v630, 1
        %v633 = vrot.slane %v630, 2
        %v634 = vrot.slane %v630, 3
        %v635 = vrot.slane %v630, 4
        %v636 = vrot.slane %v630, 5
        %v637 = vrot.slane %v630, 6
        %v638 = vrot.slane %v630, 7
        %646 = vst.msk [vmem:[#allocation4 + $0x2] sm:$0x1] %vm380, %v630
        %647 = vst.msk [vmem:[#allocation4 + $0xa] sm:$0x1] %vm380, %v632
        %648 = vst.msk [vmem:[#allocation4 + $0x12] sm:$0x1] %vm380, %v633
        %649 = vst.msk [vmem:[#allocation4 + $0x1a] sm:$0x1] %vm380, %v634
        %650 = vst.msk [vmem:[#allocation4 + $0x22] sm:$0x1] %vm380, %v635
        %651 = vst.msk [vmem:[#allocation4 + $0x2a] sm:$0x1] %vm380, %v636
        %652 = vst.msk [vmem:[#allocation4 + $0x32] sm:$0x1] %vm380, %v637
        %653 = vst.msk [vmem:[#allocation4 + $0x3a] sm:$0x1] %vm380, %v638
        %654 = vmatpush.msra.mxu0 0.0
        %655 = vmatpush.msra.mxu0 0.0
        %656 = vmatpush.msra.mxu0 0.0
        %657 = vmatpush.msra.mxu0 0.0
        %658 = vmatpush.msra.mxu0 0.0
        %659 = vmatpush.msra.mxu0 0.0
        %660 = vmatpush.msra.mxu0 0.0
        %661 = vmatpush.msra.mxu0 0.0
        %662 = vmatpush.msra.mxu0 0.0
        %663 = vmatpush.msra.mxu0 0.0
        %664 = vmatpush.msra.mxu0 0.0
        %665 = vmatpush.msra.mxu0 0.0
        %666 = vmatpush.msra.mxu0 0.0
        %667 = vmatpush.msra.mxu0 0.0
        %668 = vmatpush.msra.mxu0 0.0
        %669 = vmatpush.msra.mxu0 %v496
        %670 = vmatmul.f32.gmra.mxu0 %v390
        %v671 = vpop.f32.mrf.mxu0
        %v672 = vadd.f32 0.0, %v671
        %673 = vdwg.mxu0
        %674 = vmatpush.msra.mxu0 0.0
        %675 = vmatpush.msra.mxu0 0.0
        %676 = vmatpush.msra.mxu0 0.0
        %677 = vmatpush.msra.mxu0 0.0
        %678 = vmatpush.msra.mxu0 0.0
        %679 = vmatpush.msra.mxu0 0.0
        %680 = vmatpush.msra.mxu0 0.0
        %681 = vmatpush.msra.mxu0 0.0
        %682 = vmatpush.msra.mxu0 0.0
        %683 = vmatpush.msra.mxu0 0.0
        %684 = vmatpush.msra.mxu0 0.0
        %685 = vmatpush.msra.mxu0 0.0
        %686 = vmatpush.msra.mxu0 0.0
        %687 = vmatpush.msra.mxu0 0.0
        %688 = vmatpush.msra.mxu0 0.0
        %689 = vmatpush.msra.mxu0 %v468
        %690 = vmatmul.f32.gmra.mxu0 %v413
        %v691 = vpop.f32.mrf.mxu0
        %v692 = vadd.f32 %v672, %v691
        %693 = vdwg.mxu0
        %694 = vmatpush.msra.mxu0 0.0
        %695 = vmatpush.msra.mxu0 0.0
        %696 = vmatpush.msra.mxu0 0.0
        %697 = vmatpush.msra.mxu0 0.0
        %698 = vmatpush.msra.mxu0 0.0
        %699 = vmatpush.msra.mxu0 0.0
        %700 = vmatpush.msra.mxu0 0.0
        %701 = vmatpush.msra.mxu0 0.0
        %702 = vmatpush.msra.mxu0 0.0
        %703 = vmatpush.msra.mxu0 0.0
        %704 = vmatpush.msra.mxu0 0.0
        %705 = vmatpush.msra.mxu0 0.0
        %706 = vmatpush.msra.mxu0 0.0
        %707 = vmatpush.msra.mxu0 0.0
        %708 = vmatpush.msra.mxu0 0.0
        %709 = vmatpush.msra.mxu0 %v524
        %710 = vmatmul.f32.gmra.mxu0 %v436
        %v711 = vpop.f32.mrf.mxu0
        %v712 = vadd.f32 0.0, %v711
        %713 = vdwg.mxu0
        %v714 = vadd.f32 %v692, %v712
        %v715 = vrot.slane %v262, 5
        %v716 = vrot.slane %v264, 4
        %v717 = vsel %vm275, %v716, %v715
        %v718 = vrot.slane %v266, 3
        %v719 = vsel %vm278, %v718, %v717
        %v720 = vrot.slane %v268, 2
        %v721 = vsel %vm281, %v720, %v719
        %v722 = vsel %vm289, %v721, 0
        %724 = vmatpush.msra.mxu0 0.0
        %725 = vmatpush.msra.mxu0 0.0
        %726 = vmatpush.msra.mxu0 0.0
        %727 = vmatpush.msra.mxu0 0.0
        %728 = vmatpush.msra.mxu0 0.0
        %729 = vmatpush.msra.mxu0 0.0
        %730 = vmatpush.msra.mxu0 0.0
        %731 = vmatpush.msra.mxu0 0.0
        %732 = vmatpush.msra.mxu0 0.0
        %733 = vmatpush.msra.mxu0 0.0
        %734 = vmatpush.msra.mxu0 0.0
        %735 = vmatpush.msra.mxu0 0.0
        %736 = vmatpush.msra.mxu0 0.0
        %737 = vmatpush.msra.mxu0 0.0
        %738 = vmatpush.msra.mxu0 0.0
        %739 = vmatpush.msra.mxu0 %v722
        %740 = vmatmul.f32.gmra.mxu0 %v466
        %v741 = vpop.f32.mrf.mxu0
        %v742 = vadd.f32 0.0, %v741
        %743 = vdwg.mxu0
        %v744 = vadd.f32 %v714, %v742
        %745 = vrot.lane.b32.xlu0 %v721, 127
        %v746 = vpop.permute.xlu0 %745
        %v747 = vsel %vm289, %v746, 0
        %749 = vmatpush.msra.mxu0 0.0
        %750 = vmatpush.msra.mxu0 0.0
        %751 = vmatpush.msra.mxu0 0.0
        %752 = vmatpush.msra.mxu0 0.0
        %753 = vmatpush.msra.mxu0 0.0
        %754 = vmatpush.msra.mxu0 0.0
        %755 = vmatpush.msra.mxu0 0.0
        %756 = vmatpush.msra.mxu0 0.0
        %757 = vmatpush.msra.mxu0 0.0
        %758 = vmatpush.msra.mxu0 0.0
        %759 = vmatpush.msra.mxu0 0.0
        %760 = vmatpush.msra.mxu0 0.0
        %761 = vmatpush.msra.mxu0 0.0
        %762 = vmatpush.msra.mxu0 0.0
        %763 = vmatpush.msra.mxu0 0.0
        %764 = vmatpush.msra.mxu0 %v747
        %765 = vmatmul.f32.gmra.mxu0 %v494
        %v766 = vpop.f32.mrf.mxu0
        %v767 = vadd.f32 0.0, %v766
        %768 = vdwg.mxu0
        %v769 = vadd.f32 %v744, %v767
        %770 = vrot.lane.b32.xlu0 %v721, 126
        %v771 = vpop.permute.xlu0 %770
        %v772 = vsel %vm289, %v771, 0
        %774 = vmatpush.msra.mxu0 0.0
        %775 = vmatpush.msra.mxu0 0.0
        %776 = vmatpush.msra.mxu0 0.0
        %777 = vmatpush.msra.mxu0 0.0
        %778 = vmatpush.msra.mxu0 0.0
        %779 = vmatpush.msra.mxu0 0.0
        %780 = vmatpush.msra.mxu0 0.0
        %781 = vmatpush.msra.mxu0 0.0
        %782 = vmatpush.msra.mxu0 0.0
        %783 = vmatpush.msra.mxu0 0.0
        %784 = vmatpush.msra.mxu0 0.0
        %785 = vmatpush.msra.mxu0 0.0
        %786 = vmatpush.msra.mxu0 0.0
        %787 = vmatpush.msra.mxu0 0.0
        %788 = vmatpush.msra.mxu0 0.0
        %789 = vmatpush.msra.mxu0 %v772
        %790 = vmatmul.f32.gmra.mxu0 %v522
        %v791 = vpop.f32.mrf.mxu0
        %v792 = vadd.f32 0.0, %v791
        %793 = vdwg.mxu0
        %v794 = vadd.f32 %v769, %v792
        %v796 = vrot.slane %v794, 1
        %v797 = vrot.slane %v794, 2
        %v798 = vrot.slane %v794, 3
        %v799 = vrot.slane %v794, 4
        %v800 = vrot.slane %v794, 5
        %v801 = vrot.slane %v794, 6
        %v802 = vrot.slane %v794, 7
        %810 = vst.msk [vmem:[#allocation4 + $0x3] sm:$0x1] %vm380, %v794
        %811 = vst.msk [vmem:[#allocation4 + $0xb] sm:$0x1] %vm380, %v796
        %812 = vst.msk [vmem:[#allocation4 + $0x13] sm:$0x1] %vm380, %v797
        %813 = vst.msk [vmem:[#allocation4 + $0x1b] sm:$0x1] %vm380, %v798
        %814 = vst.msk [vmem:[#allocation4 + $0x23] sm:$0x1] %vm380, %v799
        %815 = vst.msk [vmem:[#allocation4 + $0x2b] sm:$0x1] %vm380, %v800
        %816 = vst.msk [vmem:[#allocation4 + $0x33] sm:$0x1] %vm380, %v801
        %817 = vst.msk [vmem:[#allocation4 + $0x3b] sm:$0x1] %vm380, %v802
        %818 = vmatpush.msra.mxu0 0.0
        %819 = vmatpush.msra.mxu0 0.0
        %820 = vmatpush.msra.mxu0 0.0
        %821 = vmatpush.msra.mxu0 0.0
        %822 = vmatpush.msra.mxu0 0.0
        %823 = vmatpush.msra.mxu0 0.0
        %824 = vmatpush.msra.mxu0 0.0
        %825 = vmatpush.msra.mxu0 0.0
        %826 = vmatpush.msra.mxu0 0.0
        %827 = vmatpush.msra.mxu0 0.0
        %828 = vmatpush.msra.mxu0 0.0
        %829 = vmatpush.msra.mxu0 0.0
        %830 = vmatpush.msra.mxu0 0.0
        %831 = vmatpush.msra.mxu0 0.0
        %832 = vmatpush.msra.mxu0 0.0
        %833 = vmatpush.msra.mxu0 %v747
        %834 = vmatmul.f32.gmra.mxu0 %v287
        %v835 = vpop.f32.mrf.mxu0
        %v836 = vadd.f32 0.0, %v835
        %837 = vdwg.mxu0
        %838 = vmatpush.msra.mxu0 0.0
        %839 = vmatpush.msra.mxu0 0.0
        %840 = vmatpush.msra.mxu0 0.0
        %841 = vmatpush.msra.mxu0 0.0
        %842 = vmatpush.msra.mxu0 0.0
        %843 = vmatpush.msra.mxu0 0.0
        %844 = vmatpush.msra.mxu0 0.0
        %845 = vmatpush.msra.mxu0 0.0
        %846 = vmatpush.msra.mxu0 0.0
        %847 = vmatpush.msra.mxu0 0.0
        %848 = vmatpush.msra.mxu0 0.0
        %849 = vmatpush.msra.mxu0 0.0
        %850 = vmatpush.msra.mxu0 0.0
        %851 = vmatpush.msra.mxu0 0.0
        %852 = vmatpush.msra.mxu0 0.0
        %853 = vmatpush.msra.mxu0 %v722
        %854 = vmatmul.f32.gmra.mxu0 %v313
        %v855 = vpop.f32.mrf.mxu0
        %v856 = vadd.f32 %v836, %v855
        %857 = vdwg.mxu0
        %858 = vmatpush.msra.mxu0 0.0
        %859 = vmatpush.msra.mxu0 0.0
        %860 = vmatpush.msra.mxu0 0.0
        %861 = vmatpush.msra.mxu0 0.0
        %862 = vmatpush.msra.mxu0 0.0
        %863 = vmatpush.msra.mxu0 0.0
        %864 = vmatpush.msra.mxu0 0.0
        %865 = vmatpush.msra.mxu0 0.0
        %866 = vmatpush.msra.mxu0 0.0
        %867 = vmatpush.msra.mxu0 0.0
        %868 = vmatpush.msra.mxu0 0.0
        %869 = vmatpush.msra.mxu0 0.0
        %870 = vmatpush.msra.mxu0 0.0
        %871 = vmatpush.msra.mxu0 0.0
        %872 = vmatpush.msra.mxu0 0.0
        %873 = vmatpush.msra.mxu0 %v772
        %874 = vmatmul.f32.gmra.mxu0 %v340
        %v875 = vpop.f32.mrf.mxu0
        %v876 = vadd.f32 0.0, %v875
        %877 = vdwg.mxu0
        %v878 = vadd.f32 %v856, %v876
        %v880 = vrot.slane %v878, 1
        %v881 = vrot.slane %v878, 2
        %v882 = vrot.slane %v878, 3
        %v883 = vrot.slane %v878, 4
        %v884 = vrot.slane %v878, 5
        %v885 = vrot.slane %v878, 6
        %v886 = vrot.slane %v878, 7
        %894 = vst.msk [vmem:[#allocation4 + $0x4] sm:$0x1] %vm380, %v878
        %895 = vst.msk [vmem:[#allocation4 + $0xc] sm:$0x1] %vm380, %v880
        %896 = vst.msk [vmem:[#allocation4 + $0x14] sm:$0x1] %vm380, %v881
        %897 = vst.msk [vmem:[#allocation4 + $0x1c] sm:$0x1] %vm380, %v882
        %898 = vst.msk [vmem:[#allocation4 + $0x24] sm:$0x1] %vm380, %v883
        %899 = vst.msk [vmem:[#allocation4 + $0x2c] sm:$0x1] %vm380, %v884
        %900 = vst.msk [vmem:[#allocation4 + $0x34] sm:$0x1] %vm380, %v885
        %901 = vst.msk [vmem:[#allocation4 + $0x3c] sm:$0x1] %vm380, %v886
        %902 = vmatpush.msra.mxu0 0.0
        %903 = vmatpush.msra.mxu0 0.0
        %904 = vmatpush.msra.mxu0 0.0
        %905 = vmatpush.msra.mxu0 0.0
        %906 = vmatpush.msra.mxu0 0.0
        %907 = vmatpush.msra.mxu0 0.0
        %908 = vmatpush.msra.mxu0 0.0
        %909 = vmatpush.msra.mxu0 0.0
        %910 = vmatpush.msra.mxu0 0.0
        %911 = vmatpush.msra.mxu0 0.0
        %912 = vmatpush.msra.mxu0 0.0
        %913 = vmatpush.msra.mxu0 0.0
        %914 = vmatpush.msra.mxu0 0.0
        %915 = vmatpush.msra.mxu0 0.0
        %916 = vmatpush.msra.mxu0 0.0
        %917 = vmatpush.msra.mxu0 %v747
        %918 = vmatmul.f32.gmra.mxu0 %v390
        %v919 = vpop.f32.mrf.mxu0
        %v920 = vadd.f32 0.0, %v919
        %921 = vdwg.mxu0
        %922 = vmatpush.msra.mxu0 0.0
        %923 = vmatpush.msra.mxu0 0.0
        %924 = vmatpush.msra.mxu0 0.0
        %925 = vmatpush.msra.mxu0 0.0
        %926 = vmatpush.msra.mxu0 0.0
        %927 = vmatpush.msra.mxu0 0.0
        %928 = vmatpush.msra.mxu0 0.0
        %929 = vmatpush.msra.mxu0 0.0
        %930 = vmatpush.msra.mxu0 0.0
        %931 = vmatpush.msra.mxu0 0.0
        %932 = vmatpush.msra.mxu0 0.0
        %933 = vmatpush.msra.mxu0 0.0
        %934 = vmatpush.msra.mxu0 0.0
        %935 = vmatpush.msra.mxu0 0.0
        %936 = vmatpush.msra.mxu0 0.0
        %937 = vmatpush.msra.mxu0 %v722
        %938 = vmatmul.f32.gmra.mxu0 %v413
        %v939 = vpop.f32.mrf.mxu0
        %v940 = vadd.f32 %v920, %v939
        %941 = vdwg.mxu0
        %942 = vmatpush.msra.mxu0 0.0
        %943 = vmatpush.msra.mxu0 0.0
        %944 = vmatpush.msra.mxu0 0.0
        %945 = vmatpush.msra.mxu0 0.0
        %946 = vmatpush.msra.mxu0 0.0
        %947 = vmatpush.msra.mxu0 0.0
        %948 = vmatpush.msra.mxu0 0.0
        %949 = vmatpush.msra.mxu0 0.0
        %950 = vmatpush.msra.mxu0 0.0
        %951 = vmatpush.msra.mxu0 0.0
        %952 = vmatpush.msra.mxu0 0.0
        %953 = vmatpush.msra.mxu0 0.0
        %954 = vmatpush.msra.mxu0 0.0
        %955 = vmatpush.msra.mxu0 0.0
        %956 = vmatpush.msra.mxu0 0.0
        %957 = vmatpush.msra.mxu0 %v772
        %958 = vmatmul.f32.gmra.mxu0 %v436
        %v959 = vpop.f32.mrf.mxu0
        %v960 = vadd.f32 0.0, %v959
        %961 = vdwg.mxu0
        %v962 = vadd.f32 %v940, %v960
        %v963 = vrot.slane %v262, 7
        %v964 = vrot.slane %v264, 6
        %v965 = vsel %vm275, %v964, %v963
        %v966 = vrot.slane %v266, 5
        %v967 = vsel %vm278, %v966, %v965
        %v968 = vrot.slane %v268, 4
        %v969 = vsel %vm281, %v968, %v967
        %v970 = vsel %vm289, %v969, 0
        %972 = vmatpush.msra.mxu0 0.0
        %973 = vmatpush.msra.mxu0 0.0
        %974 = vmatpush.msra.mxu0 0.0
        %975 = vmatpush.msra.mxu0 0.0
        %976 = vmatpush.msra.mxu0 0.0
        %977 = vmatpush.msra.mxu0 0.0
        %978 = vmatpush.msra.mxu0 0.0
        %979 = vmatpush.msra.mxu0 0.0
        %980 = vmatpush.msra.mxu0 0.0
        %981 = vmatpush.msra.mxu0 0.0
        %982 = vmatpush.msra.mxu0 0.0
        %983 = vmatpush.msra.mxu0 0.0
        %984 = vmatpush.msra.mxu0 0.0
        %985 = vmatpush.msra.mxu0 0.0
        %986 = vmatpush.msra.mxu0 0.0
        %987 = vmatpush.msra.mxu0 %v970
        %988 = vmatmul.f32.gmra.mxu0 %v466
        %v989 = vpop.f32.mrf.mxu0
        %v990 = vadd.f32 0.0, %v989
        %991 = vdwg.mxu0
        %v992 = vadd.f32 %v962, %v990
        %993 = vrot.lane.b32.xlu0 %v969, 127
        %v994 = vpop.permute.xlu0 %993
        %v995 = vsel %vm289, %v994, 0
        %997 = vmatpush.msra.mxu0 0.0
        %998 = vmatpush.msra.mxu0 0.0
        %999 = vmatpush.msra.mxu0 0.0
        %1000 = vmatpush.msra.mxu0 0.0
        %1001 = vmatpush.msra.mxu0 0.0
        %1002 = vmatpush.msra.mxu0 0.0
        %1003 = vmatpush.msra.mxu0 0.0
        %1004 = vmatpush.msra.mxu0 0.0
        %1005 = vmatpush.msra.mxu0 0.0
        %1006 = vmatpush.msra.mxu0 0.0
        %1007 = vmatpush.msra.mxu0 0.0
        %1008 = vmatpush.msra.mxu0 0.0
        %1009 = vmatpush.msra.mxu0 0.0
        %1010 = vmatpush.msra.mxu0 0.0
        %1011 = vmatpush.msra.mxu0 0.0
        %1012 = vmatpush.msra.mxu0 %v995
        %1013 = vmatmul.f32.gmra.mxu0 %v494
        %v1014 = vpop.f32.mrf.mxu0
        %v1015 = vadd.f32 0.0, %v1014
        %1016 = vdwg.mxu0
        %v1017 = vadd.f32 %v992, %v1015
        %1018 = vrot.lane.b32.xlu0 %v969, 126
        %v1019 = vpop.permute.xlu0 %1018
        %v1020 = vsel %vm289, %v1019, 0
        %1022 = vmatpush.msra.mxu0 0.0
        %1023 = vmatpush.msra.mxu0 0.0
        %1024 = vmatpush.msra.mxu0 0.0
        %1025 = vmatpush.msra.mxu0 0.0
        %1026 = vmatpush.msra.mxu0 0.0
        %1027 = vmatpush.msra.mxu0 0.0
        %1028 = vmatpush.msra.mxu0 0.0
        %1029 = vmatpush.msra.mxu0 0.0
        %1030 = vmatpush.msra.mxu0 0.0
        %1031 = vmatpush.msra.mxu0 0.0
        %1032 = vmatpush.msra.mxu0 0.0
        %1033 = vmatpush.msra.mxu0 0.0
        %1034 = vmatpush.msra.mxu0 0.0
        %1035 = vmatpush.msra.mxu0 0.0
        %1036 = vmatpush.msra.mxu0 0.0
        %1037 = vmatpush.msra.mxu0 %v1020
        %1038 = vmatmul.f32.gmra.mxu0 %v522
        %v1039 = vpop.f32.mrf.mxu0
        %v1040 = vadd.f32 0.0, %v1039
        %1041 = vdwg.mxu0
        %v1042 = vadd.f32 %v1017, %v1040
        %v1044 = vrot.slane %v1042, 1
        %v1045 = vrot.slane %v1042, 2
        %v1046 = vrot.slane %v1042, 3
        %v1047 = vrot.slane %v1042, 4
        %v1048 = vrot.slane %v1042, 5
        %v1049 = vrot.slane %v1042, 6
        %v1050 = vrot.slane %v1042, 7
        %1058 = vst.msk [vmem:[#allocation4 + $0x5] sm:$0x1] %vm380, %v1042
        %1059 = vst.msk [vmem:[#allocation4 + $0xd] sm:$0x1] %vm380, %v1044
        %1060 = vst.msk [vmem:[#allocation4 + $0x15] sm:$0x1] %vm380, %v1045
        %1061 = vst.msk [vmem:[#allocation4 + $0x1d] sm:$0x1] %vm380, %v1046
        %1062 = vst.msk [vmem:[#allocation4 + $0x25] sm:$0x1] %vm380, %v1047
        %1063 = vst.msk [vmem:[#allocation4 + $0x2d] sm:$0x1] %vm380, %v1048
        %1064 = vst.msk [vmem:[#allocation4 + $0x35] sm:$0x1] %vm380, %v1049
        %1065 = vst.msk [vmem:[#allocation4 + $0x3d] sm:$0x1] %vm380, %v1050
        %1066 = vmatpush.msra.mxu0 0.0
        %1067 = vmatpush.msra.mxu0 0.0
        %1068 = vmatpush.msra.mxu0 0.0
        %1069 = vmatpush.msra.mxu0 0.0
        %1070 = vmatpush.msra.mxu0 0.0
        %1071 = vmatpush.msra.mxu0 0.0
        %1072 = vmatpush.msra.mxu0 0.0
        %1073 = vmatpush.msra.mxu0 0.0
        %1074 = vmatpush.msra.mxu0 0.0
        %1075 = vmatpush.msra.mxu0 0.0
        %1076 = vmatpush.msra.mxu0 0.0
        %1077 = vmatpush.msra.mxu0 0.0
        %1078 = vmatpush.msra.mxu0 0.0
        %1079 = vmatpush.msra.mxu0 0.0
        %1080 = vmatpush.msra.mxu0 0.0
        %1081 = vmatpush.msra.mxu0 %v995
        %1082 = vmatmul.f32.gmra.mxu0 %v287
        %v1083 = vpop.f32.mrf.mxu0
        %v1084 = vadd.f32 0.0, %v1083
        %1085 = vdwg.mxu0
        %1086 = vmatpush.msra.mxu0 0.0
        %1087 = vmatpush.msra.mxu0 0.0
        %1088 = vmatpush.msra.mxu0 0.0
        %1089 = vmatpush.msra.mxu0 0.0
        %1090 = vmatpush.msra.mxu0 0.0
        %1091 = vmatpush.msra.mxu0 0.0
        %1092 = vmatpush.msra.mxu0 0.0
        %1093 = vmatpush.msra.mxu0 0.0
        %1094 = vmatpush.msra.mxu0 0.0
        %1095 = vmatpush.msra.mxu0 0.0
        %1096 = vmatpush.msra.mxu0 0.0
        %1097 = vmatpush.msra.mxu0 0.0
        %1098 = vmatpush.msra.mxu0 0.0
        %1099 = vmatpush.msra.mxu0 0.0
        %1100 = vmatpush.msra.mxu0 0.0
        %1101 = vmatpush.msra.mxu0 %v970
        %1102 = vmatmul.f32.gmra.mxu0 %v313
        %v1103 = vpop.f32.mrf.mxu0
        %v1104 = vadd.f32 %v1084, %v1103
        %1105 = vdwg.mxu0
        %1106 = vmatpush.msra.mxu0 0.0
        %1107 = vmatpush.msra.mxu0 0.0
        %1108 = vmatpush.msra.mxu0 0.0
        %1109 = vmatpush.msra.mxu0 0.0
        %1110 = vmatpush.msra.mxu0 0.0
        %1111 = vmatpush.msra.mxu0 0.0
        %1112 = vmatpush.msra.mxu0 0.0
        %1113 = vmatpush.msra.mxu0 0.0
        %1114 = vmatpush.msra.mxu0 0.0
        %1115 = vmatpush.msra.mxu0 0.0
        %1116 = vmatpush.msra.mxu0 0.0
        %1117 = vmatpush.msra.mxu0 0.0
        %1118 = vmatpush.msra.mxu0 0.0
        %1119 = vmatpush.msra.mxu0 0.0
        %1120 = vmatpush.msra.mxu0 0.0
        %1121 = vmatpush.msra.mxu0 %v1020
        %1122 = vmatmul.f32.gmra.mxu0 %v340
        %v1123 = vpop.f32.mrf.mxu0
        %v1124 = vadd.f32 0.0, %v1123
        %1125 = vdwg.mxu0
        %v1126 = vadd.f32 %v1104, %v1124
        %v1128 = vrot.slane %v1126, 1
        %v1129 = vrot.slane %v1126, 2
        %v1130 = vrot.slane %v1126, 3
        %v1131 = vrot.slane %v1126, 4
        %v1132 = vrot.slane %v1126, 5
        %v1133 = vrot.slane %v1126, 6
        %v1134 = vrot.slane %v1126, 7
        %1142 = vst.msk [vmem:[#allocation4 + $0x6] sm:$0x1] %vm380, %v1126
        %1143 = vst.msk [vmem:[#allocation4 + $0xe] sm:$0x1] %vm380, %v1128
        %1144 = vst.msk [vmem:[#allocation4 + $0x16] sm:$0x1] %vm380, %v1129
        %1145 = vst.msk [vmem:[#allocation4 + $0x1e] sm:$0x1] %vm380, %v1130
        %1146 = vst.msk [vmem:[#allocation4 + $0x26] sm:$0x1] %vm380, %v1131
        %1147 = vst.msk [vmem:[#allocation4 + $0x2e] sm:$0x1] %vm380, %v1132
        %1148 = vst.msk [vmem:[#allocation4 + $0x36] sm:$0x1] %vm380, %v1133
        %1149 = vst.msk [vmem:[#allocation4 + $0x3e] sm:$0x1] %vm380, %v1134
        %1150 = vmatpush.msra.mxu0 0.0
        %1151 = vmatpush.msra.mxu0 0.0
        %1152 = vmatpush.msra.mxu0 0.0
        %1153 = vmatpush.msra.mxu0 0.0
        %1154 = vmatpush.msra.mxu0 0.0
        %1155 = vmatpush.msra.mxu0 0.0
        %1156 = vmatpush.msra.mxu0 0.0
        %1157 = vmatpush.msra.mxu0 0.0
        %1158 = vmatpush.msra.mxu0 0.0
        %1159 = vmatpush.msra.mxu0 0.0
        %1160 = vmatpush.msra.mxu0 0.0
        %1161 = vmatpush.msra.mxu0 0.0
        %1162 = vmatpush.msra.mxu0 0.0
        %1163 = vmatpush.msra.mxu0 0.0
        %1164 = vmatpush.msra.mxu0 0.0
        %1165 = vmatpush.msra.mxu0 %v995
        %1166 = vmatmul.f32.gmra.mxu0 %v390
        %v1167 = vpop.f32.mrf.mxu0
        %v1168 = vadd.f32 0.0, %v1167
        %1169 = vdwg.mxu0
        %1170 = vmatpush.msra.mxu0 0.0
        %1171 = vmatpush.msra.mxu0 0.0
        %1172 = vmatpush.msra.mxu0 0.0
        %1173 = vmatpush.msra.mxu0 0.0
        %1174 = vmatpush.msra.mxu0 0.0
        %1175 = vmatpush.msra.mxu0 0.0
        %1176 = vmatpush.msra.mxu0 0.0
        %1177 = vmatpush.msra.mxu0 0.0
        %1178 = vmatpush.msra.mxu0 0.0
        %1179 = vmatpush.msra.mxu0 0.0
        %1180 = vmatpush.msra.mxu0 0.0
        %1181 = vmatpush.msra.mxu0 0.0
        %1182 = vmatpush.msra.mxu0 0.0
        %1183 = vmatpush.msra.mxu0 0.0
        %1184 = vmatpush.msra.mxu0 0.0
        %1185 = vmatpush.msra.mxu0 %v970
        %1186 = vmatmul.f32.gmra.mxu0 %v413
        %v1187 = vpop.f32.mrf.mxu0
        %v1188 = vadd.f32 %v1168, %v1187
        %1189 = vdwg.mxu0
        %1190 = vmatpush.msra.mxu0 0.0
        %1191 = vmatpush.msra.mxu0 0.0
        %1192 = vmatpush.msra.mxu0 0.0
        %1193 = vmatpush.msra.mxu0 0.0
        %1194 = vmatpush.msra.mxu0 0.0
        %1195 = vmatpush.msra.mxu0 0.0
        %1196 = vmatpush.msra.mxu0 0.0
        %1197 = vmatpush.msra.mxu0 0.0
        %1198 = vmatpush.msra.mxu0 0.0
        %1199 = vmatpush.msra.mxu0 0.0
        %1200 = vmatpush.msra.mxu0 0.0
        %1201 = vmatpush.msra.mxu0 0.0
        %1202 = vmatpush.msra.mxu0 0.0
        %1203 = vmatpush.msra.mxu0 0.0
        %1204 = vmatpush.msra.mxu0 0.0
        %1205 = vmatpush.msra.mxu0 %v1020
        %1206 = vmatmul.f32.gmra.mxu0 %v436
        %v1207 = vpop.f32.mrf.mxu0
        %v1208 = vadd.f32 0.0, %v1207
        %1209 = vdwg.mxu0
        %v1210 = vadd.f32 %v1188, %v1208
        %v1215 = vrot.slane %v263, 1
        %v1216 = vsel %vm275, %v265, %v1215
        %v1217 = vrot.slane %v267, 7
        %v1218 = vsel %vm278, %v1217, %v1216
        %v1219 = vrot.slane %v269, 6
        %v1220 = vsel %vm281, %v1219, %v1218
        %v1221 = vsel %vm289, %v1220, 0
        %1223 = vmatpush.msra.mxu0 0.0
        %1224 = vmatpush.msra.mxu0 0.0
        %1225 = vmatpush.msra.mxu0 0.0
        %1226 = vmatpush.msra.mxu0 0.0
        %1227 = vmatpush.msra.mxu0 0.0
        %1228 = vmatpush.msra.mxu0 0.0
        %1229 = vmatpush.msra.mxu0 0.0
        %1230 = vmatpush.msra.mxu0 0.0
        %1231 = vmatpush.msra.mxu0 0.0
        %1232 = vmatpush.msra.mxu0 0.0
        %1233 = vmatpush.msra.mxu0 0.0
        %1234 = vmatpush.msra.mxu0 0.0
        %1235 = vmatpush.msra.mxu0 0.0
        %1236 = vmatpush.msra.mxu0 0.0
        %1237 = vmatpush.msra.mxu0 0.0
        %1238 = vmatpush.msra.mxu0 %v1221
        %1239 = vmatmul.f32.gmra.mxu0 %v466
        %v1240 = vpop.f32.mrf.mxu0
        %v1241 = vadd.f32 0.0, %v1240
        %1242 = vdwg.mxu0
        %v1243 = vadd.f32 %v1210, %v1241
        %1244 = vrot.lane.b32.xlu0 %v1220, 127
        %v1245 = vpop.permute.xlu0 %1244
        %v1246 = vsel %vm289, %v1245, 0
        %1248 = vmatpush.msra.mxu0 0.0
        %1249 = vmatpush.msra.mxu0 0.0
        %1250 = vmatpush.msra.mxu0 0.0
        %1251 = vmatpush.msra.mxu0 0.0
        %1252 = vmatpush.msra.mxu0 0.0
        %1253 = vmatpush.msra.mxu0 0.0
        %1254 = vmatpush.msra.mxu0 0.0
        %1255 = vmatpush.msra.mxu0 0.0
        %1256 = vmatpush.msra.mxu0 0.0
        %1257 = vmatpush.msra.mxu0 0.0
        %1258 = vmatpush.msra.mxu0 0.0
        %1259 = vmatpush.msra.mxu0 0.0
        %1260 = vmatpush.msra.mxu0 0.0
        %1261 = vmatpush.msra.mxu0 0.0
        %1262 = vmatpush.msra.mxu0 0.0
        %1263 = vmatpush.msra.mxu0 %v1246
        %1264 = vmatmul.f32.gmra.mxu0 %v494
        %v1265 = vpop.f32.mrf.mxu0
        %v1266 = vadd.f32 0.0, %v1265
        %1267 = vdwg.mxu0
        %v1268 = vadd.f32 %v1243, %v1266
        %1269 = vrot.lane.b32.xlu0 %v1220, 126
        %v1270 = vpop.permute.xlu0 %1269
        %v1271 = vsel %vm289, %v1270, 0
        %1273 = vmatpush.msra.mxu0 0.0
        %1274 = vmatpush.msra.mxu0 0.0
        %1275 = vmatpush.msra.mxu0 0.0
        %1276 = vmatpush.msra.mxu0 0.0
        %1277 = vmatpush.msra.mxu0 0.0
        %1278 = vmatpush.msra.mxu0 0.0
        %1279 = vmatpush.msra.mxu0 0.0
        %1280 = vmatpush.msra.mxu0 0.0
        %1281 = vmatpush.msra.mxu0 0.0
        %1282 = vmatpush.msra.mxu0 0.0
        %1283 = vmatpush.msra.mxu0 0.0
        %1284 = vmatpush.msra.mxu0 0.0
        %1285 = vmatpush.msra.mxu0 0.0
        %1286 = vmatpush.msra.mxu0 0.0
        %1287 = vmatpush.msra.mxu0 0.0
        %1288 = vmatpush.msra.mxu0 %v1271
        %1289 = vmatmul.f32.gmra.mxu0 %v522
        %v1290 = vpop.f32.mrf.mxu0
        %v1291 = vadd.f32 0.0, %v1290
        %1292 = vdwg.mxu0
        %v1293 = vadd.f32 %v1268, %v1291
        %v1295 = vrot.slane %v1293, 1
        %v1296 = vrot.slane %v1293, 2
        %v1297 = vrot.slane %v1293, 3
        %v1298 = vrot.slane %v1293, 4
        %v1299 = vrot.slane %v1293, 5
        %v1300 = vrot.slane %v1293, 6
        %v1301 = vrot.slane %v1293, 7
        %1309 = vst.msk [vmem:[#allocation4 + $0x7] sm:$0x1] %vm380, %v1293
        %1310 = vst.msk [vmem:[#allocation4 + $0xf] sm:$0x1] %vm380, %v1295
        %1311 = vst.msk [vmem:[#allocation4 + $0x17] sm:$0x1] %vm380, %v1296
        %1312 = vst.msk [vmem:[#allocation4 + $0x1f] sm:$0x1] %vm380, %v1297
        %1313 = vst.msk [vmem:[#allocation4 + $0x27] sm:$0x1] %vm380, %v1298
        %1314 = vst.msk [vmem:[#allocation4 + $0x2f] sm:$0x1] %vm380, %v1299
        %1315 = vst.msk [vmem:[#allocation4 + $0x37] sm:$0x1] %vm380, %v1300
        %1316 = vst.msk [vmem:[#allocation4 + $0x3f] sm:$0x1] %vm380, %v1301
        %v1317 = vld [vmem:[#allocation4] sm:$0xff]
        %v1318 = vld [vmem:[#allocation4 + $0x8] sm:$0xff]
        %v1319 = vld [vmem:[#allocation4 + $0x10] sm:$0xff]
        %v1320 = vld [vmem:[#allocation4 + $0x18] sm:$0xff]
        %v1321 = vld [vmem:[#allocation4 + $0x20] sm:$0xff]
        %v1322 = vld [vmem:[#allocation4 + $0x28] sm:$0xff]
        %v1323 = vld [vmem:[#allocation4 + $0x30] sm:$0xff]
        %v1324 = vld [vmem:[#allocation4 + $0x38] sm:$0xff]
        %v1326 = vrot.slane %v259, 1
        %v1327 = vrot.slane %v259, 2
        %v1328 = vrot.slane %v259, 3
        %v1329 = vrot.slane %v259, 4
        %v1330 = vrot.slane %v259, 5
        %v1331 = vrot.slane %v259, 6
        %v1332 = vrot.slane %v259, 7
        %v1333 = vperm.slane %v259, 0
        %v1334 = vperm.slane %v1326, 0
        %v1335 = vperm.slane %v1327, 0
        %v1336 = vperm.slane %v1328, 0
        %v1337 = vperm.slane %v1329, 0
        %v1338 = vperm.slane %v1330, 0
        %v1339 = vperm.slane %v1331, 0
        %v1340 = vperm.slane %v1332, 0
        %1341 = vset.pattern.permute.xlu0 0
        %1342 = vperm.xlu0 %1341, %v1333
        %v1343 = vpop.permute.xlu0 %1342
        %1345 = vset.pattern.permute.xlu0 0
        %1346 = vperm.xlu0 %1345, %v1334
        %v1347 = vpop.permute.xlu0 %1346
        %1349 = vset.pattern.permute.xlu0 0
        %1350 = vperm.xlu0 %1349, %v1335
        %v1351 = vpop.permute.xlu0 %1350
        %1353 = vset.pattern.permute.xlu0 0
        %1354 = vperm.xlu0 %1353, %v1336
        %v1355 = vpop.permute.xlu0 %1354
        %1357 = vset.pattern.permute.xlu0 0
        %1358 = vperm.xlu0 %1357, %v1337
        %v1359 = vpop.permute.xlu0 %1358
        %1361 = vset.pattern.permute.xlu0 0
        %1362 = vperm.xlu0 %1361, %v1338
        %v1363 = vpop.permute.xlu0 %1362
        %1365 = vset.pattern.permute.xlu0 0
        %1366 = vperm.xlu0 %1365, %v1339
        %v1367 = vpop.permute.xlu0 %1366
        %1369 = vset.pattern.permute.xlu0 0
        %1370 = vperm.xlu0 %1369, %v1340
        %v1371 = vpop.permute.xlu0 %1370
        %v1373 = vadd.f32 %v1317, %v1343
        %v1374 = vadd.f32 %v1318, %v1347
        %v1375 = vadd.f32 %v1319, %v1351
        %v1376 = vadd.f32 %v1320, %v1355
        %v1377 = vadd.f32 %v1321, %v1359
        %v1378 = vadd.f32 %v1322, %v1363
        %v1379 = vadd.f32 %v1323, %v1367
        %v1380 = vadd.f32 %v1324, %v1371
        %s1381 = scalar_lea.vmem %s229, %s260 [#allocation5]
        %vm1382 = vcmask 261120
        %1383 = vst.msk [vmem:[%s1381] sm:$0xff] %vm1382, %v1373
        %1384 = vst.msk [vmem:[%s1381 + $0x20] sm:$0xff] %vm1382, %v1374
        %1385 = vst.msk [vmem:[%s1381 + $0x40] sm:$0xff] %vm1382, %v1375
        %1386 = vst.msk [vmem:[%s1381 + $0x60] sm:$0xff] %vm1382, %v1376
        %1387 = vst.msk [vmem:[%s1381 + $0x80] sm:$0xff] %vm1382, %v1377
        %1388 = vst.msk [vmem:[%s1381 + $0xa0] sm:$0xff] %vm1382, %v1378
        %1389 = vst.msk [vmem:[%s1381 + $0xc0] sm:$0xff] %vm1382, %v1379
        %1390 = vst.msk [vmem:[%s1381 + $0xe0] sm:$0xff] %vm1382, %v1380
        %v1391 = vld [vmem:[#allocation2] sm:$0xff]
        %v1392 = vsel %vm1382, %v1373, 0.0
        %1393 = vadd.xlane.f32.xlu0 %v1392
        %v1394 = vpop.xlane.xlu0 %1393
        %v1395 = vsel %vm1382, %v1374, 0.0
        %1396 = vadd.xlane.f32.xlu0 %v1395
        %v1397 = vpop.xlane.xlu0 %1396
        %v1398 = vsel %vm1382, %v1375, 0.0
        %1399 = vadd.xlane.f32.xlu0 %v1398
        %v1400 = vpop.xlane.xlu0 %1399
        %v1401 = vsel %vm1382, %v1376, 0.0
        %1402 = vadd.xlane.f32.xlu0 %v1401
        %v1403 = vpop.xlane.xlu0 %1402
        %v1404 = vsel %vm1382, %v1377, 0.0
        %1405 = vadd.xlane.f32.xlu0 %v1404
        %v1406 = vpop.xlane.xlu0 %1405
        %v1407 = vsel %vm1382, %v1378, 0.0
        %1408 = vadd.xlane.f32.xlu0 %v1407
        %v1409 = vpop.xlane.xlu0 %1408
        %v1410 = vsel %vm1382, %v1379, 0.0
        %1411 = vadd.xlane.f32.xlu0 %v1410
        %v1412 = vpop.xlane.xlu0 %1411
        %v1413 = vsel %vm1382, %v1380, 0.0
        %1414 = vadd.xlane.f32.xlu0 %v1413
        %v1415 = vpop.xlane.xlu0 %1414
        %v1424 = vlaneseq
        %v1425 = vand.u32 %v1424, 127
        %v1426 = vperm.slane %v1394, %v1425
        %v1427 = vperm.slane %v1397, %v1425
        %v1428 = vperm.slane %v1400, %v1425
        %v1429 = vperm.slane %v1403, %v1425
        %v1430 = vperm.slane %v1406, %v1425
        %v1431 = vperm.slane %v1409, %v1425
        %v1432 = vperm.slane %v1412, %v1425
        %v1433 = vperm.slane %v1415, %v1425
        %v1434 = vsel %vm275, %v1427, %v1426
        %v1435 = vsel %vm278, %v1428, %v1434
        %v1436 = vsel %vm281, %v1429, %v1435
        %vm1437 = vcmask 1044484
        %v1438 = vsel %vm1437, %v1430, %v1436
        %vm1439 = vcmask 1045509
        %v1440 = vsel %vm1439, %v1431, %v1438
        %vm1441 = vcmask 1046534
        %v1442 = vsel %vm1441, %v1432, %v1440
        %vm1443 = vcmask 1047559
        %v1444 = vsel %vm1443, %v1433, %v1442
        %vm1446 = vcmask 64512
        %v1447 = vsel %vm1446, %v1444, 0.0
        %1448 = vadd.xlane.f32.xlu0 %v1447
        %v1449 = vpop.xlane.xlu0 %1448
        %v1450 = vadd.f32 %v1391, %v1449
        %vm1451 = vcmask 7168
        %1452 = vst.msk [vmem:[#allocation2] sm:$0xff] %vm1451, %v1450
        %v1453 = vld [vmem:[#allocation3] sm:$0xff]
        %v1454 = vmul.f32 %v1373, %v1373
        %v1455 = vmul.f32 %v1374, %v1374
        %v1456 = vmul.f32 %v1375, %v1375
        %v1457 = vmul.f32 %v1376, %v1376
        %v1458 = vmul.f32 %v1377, %v1377
        %v1459 = vmul.f32 %v1378, %v1378
        %v1460 = vmul.f32 %v1379, %v1379
        %v1461 = vmul.f32 %v1380, %v1380
        %v1462 = vsel %vm1382, %v1454, 0.0
        %1463 = vadd.xlane.f32.xlu0 %v1462
        %v1464 = vpop.xlane.xlu0 %1463
        %v1465 = vsel %vm1382, %v1455, 0.0
        %1466 = vadd.xlane.f32.xlu0 %v1465
        %v1467 = vpop.xlane.xlu0 %1466
        %v1468 = vsel %vm1382, %v1456, 0.0
        %1469 = vadd.xlane.f32.xlu0 %v1468
        %v1470 = vpop.xlane.xlu0 %1469
        %v1471 = vsel %vm1382, %v1457, 0.0
        %1472 = vadd.xlane.f32.xlu0 %v1471
        %v1473 = vpop.xlane.xlu0 %1472
        %v1474 = vsel %vm1382, %v1458, 0.0
        %1475 = vadd.xlane.f32.xlu0 %v1474
        %v1476 = vpop.xlane.xlu0 %1475
        %v1477 = vsel %vm1382, %v1459, 0.0
        %1478 = vadd.xlane.f32.xlu0 %v1477
        %v1479 = vpop.xlane.xlu0 %1478
        %v1480 = vsel %vm1382, %v1460, 0.0
        %1481 = vadd.xlane.f32.xlu0 %v1480
        %v1482 = vpop.xlane.xlu0 %1481
        %v1483 = vsel %vm1382, %v1461, 0.0
        %1484 = vadd.xlane.f32.xlu0 %v1483
        %v1485 = vpop.xlane.xlu0 %1484
        %v1494 = vperm.slane %v1464, %v1425
        %v1495 = vperm.slane %v1467, %v1425
        %v1496 = vperm.slane %v1470, %v1425
        %v1497 = vperm.slane %v1473, %v1425
        %v1498 = vperm.slane %v1476, %v1425
        %v1499 = vperm.slane %v1479, %v1425
        %v1500 = vperm.slane %v1482, %v1425
        %v1501 = vperm.slane %v1485, %v1425
        %v1502 = vsel %vm275, %v1495, %v1494
        %v1503 = vsel %vm278, %v1496, %v1502
        %v1504 = vsel %vm281, %v1497, %v1503
        %v1505 = vsel %vm1437, %v1498, %v1504
        %v1506 = vsel %vm1439, %v1499, %v1505
        %v1507 = vsel %vm1441, %v1500, %v1506
        %v1508 = vsel %vm1443, %v1501, %v1507
        %v1510 = vsel %vm1446, %v1508, 0.0
        %1511 = vadd.xlane.f32.xlu0 %v1510
        %v1512 = vpop.xlane.xlu0 %1511
        %v1513 = vadd.f32 %v1453, %v1512
        %1514 = vst.msk [vmem:[#allocation3] sm:$0xff] %vm1451, %v1513
        %p1515 = scmp.eq.s32.totalorder %s24, 3
        // Predicated region
        $region45: #{tpu_custom_call.1} parent=39 // pred_check
          %p1516 = pneg %p1515
        $region46: #{tpu_custom_call.1} parent=39 // pred_check_branch
          %1518 = sbr.rel (%p1516) target = $region48
        $region47: #{tpu_custom_call.1} parent=39 // pred_region
          %v1519 = vld [vmem:[#allocation2] sm:$0xff]
          %v1520 = vmul.f32 %v1519, 0.0009765625
          %v1521 = vld [vmem:[#allocation3] sm:$0xff]
          %v1522 = vmul.f32 %v1521, 0.0009765625
          %v1523 = vmul.f32 %v1520, %v1520
          %v1524 = vsub.f32 %v1522, %v1523
          %v1525 = vadd.f32 %v1524, 1e-05
          %v1526 = vrsqrt.pop %v1525
          %v1527 = vmul.f32 %v1526, %v1525
          %v1528 = vmul.f32 %v1527, %v1526
          %v1529 = vmul.f32 0.5, %v1528
          %v1530 = vsub.f32 1.5, %v1529
          %v1531 = vmul.f32 %v1526, %v1530
          %vm1532 = vweird.f32 %v1525
          %vm1533 = vweird.f32 %v1526
          %vm1534 = vmor %vm1532, %vm1533
          %v1535 = vsel %vm1534, %v1526, %v1531
          %v1536 = vld [vmem:[%s3] sm:$0xff]
          %v1537 = vmul.f32 %v1535, %v1536
          %v1538 = vld [vmem:[%s4] sm:$0xff]
          %v1539 = vmul.f32 %v1520, %v1537
          %v1540 = vsub.f32 %v1538, %v1539
          %v1542 = vrot.slane %v1537, 1
          %v1543 = vrot.slane %v1537, 2
          %v1544 = vrot.slane %v1537, 3
          %v1545 = vrot.slane %v1537, 4
          %v1546 = vrot.slane %v1537, 5
          %v1547 = vrot.slane %v1537, 6
          %v1548 = vrot.slane %v1537, 7
          %v1550 = vrot.slane %v1540, 1
          %v1551 = vrot.slane %v1540, 2
          %v1552 = vrot.slane %v1540, 3
          %v1553 = vrot.slane %v1540, 4
          %v1554 = vrot.slane %v1540, 5
          %v1555 = vrot.slane %v1540, 6
          %v1556 = vrot.slane %v1540, 7
          loop: start=0, step=1, limit=4
          $region49: #{tpu_custom_call.1} parent=47 // loop_pre_header
            _
          $region50: #{tpu_custom_call.1} parent=47 // loop_header
            %s1558 = sphi 0, %s1562
            %p1559 = scmp.ge.s32.totalorder %s1558, 4
          $region51: #{tpu_custom_call.1} parent=47 // loop_header_branch
            %1561 = sbr.rel (%p1559) target = $region55
          $region52: #{tpu_custom_call.1} parent=47 // loop_body
            %s1563 = smul.u32 %s1558, 8
            %s1564 = scalar_lea.vmem %s229, %s1563 [#allocation5]
            %v1565 = vld [vmem:[%s1564] sm:$0xff]
            %v1566 = vld [vmem:[%s1564 + $0x20] sm:$0xff]
            %v1567 = vld [vmem:[%s1564 + $0x40] sm:$0xff]
            %v1568 = vld [vmem:[%s1564 + $0x60] sm:$0xff]
            %v1569 = vld [vmem:[%s1564 + $0x80] sm:$0xff]
            %v1570 = vld [vmem:[%s1564 + $0xa0] sm:$0xff]
            %v1571 = vld [vmem:[%s1564 + $0xc0] sm:$0xff]
            %v1572 = vld [vmem:[%s1564 + $0xe0] sm:$0xff]
            %v1573 = vperm.slane %v1537, 0
            %v1574 = vperm.slane %v1542, 0
            %v1575 = vperm.slane %v1543, 0
            %v1576 = vperm.slane %v1544, 0
            %v1577 = vperm.slane %v1545, 0
            %v1578 = vperm.slane %v1546, 0
            %v1579 = vperm.slane %v1547, 0
            %v1580 = vperm.slane %v1548, 0
            %1581 = vset.pattern.permute.xlu0 0
            %1582 = vperm.xlu0 %1581, %v1573
            %v1583 = vpop.permute.xlu0 %1582
            %1585 = vset.pattern.permute.xlu0 0
            %1586 = vperm.xlu0 %1585, %v1574
            %v1587 = vpop.permute.xlu0 %1586
            %1589 = vset.pattern.permute.xlu0 0
            %1590 = vperm.xlu0 %1589, %v1575
            %v1591 = vpop.permute.xlu0 %1590
            %1593 = vset.pattern.permute.xlu0 0
            %1594 = vperm.xlu0 %1593, %v1576
            %v1595 = vpop.permute.xlu0 %1594
            %1597 = vset.pattern.permute.xlu0 0
            %1598 = vperm.xlu0 %1597, %v1577
            %v1599 = vpop.permute.xlu0 %1598
            %1601 = vset.pattern.permute.xlu0 0
            %1602 = vperm.xlu0 %1601, %v1578
            %v1603 = vpop.permute.xlu0 %1602
            %1605 = vset.pattern.permute.xlu0 0
            %1606 = vperm.xlu0 %1605, %v1579
            %v1607 = vpop.permute.xlu0 %1606
            %1609 = vset.pattern.permute.xlu0 0
            %1610 = vperm.xlu0 %1609, %v1580
            %v1611 = vpop.permute.xlu0 %1610
            %v1613 = vmul.f32 %v1565, %v1583
            %v1614 = vmul.f32 %v1566, %v1587
            %v1615 = vmul.f32 %v1567, %v1591
            %v1616 = vmul.f32 %v1568, %v1595
            %v1617 = vmul.f32 %v1569, %v1599
            %v1618 = vmul.f32 %v1570, %v1603
            %v1619 = vmul.f32 %v1571, %v1607
            %v1620 = vmul.f32 %v1572, %v1611
            %v1621 = vperm.slane %v1540, 0
            %v1622 = vperm.slane %v1550, 0
            %v1623 = vperm.slane %v1551, 0
            %v1624 = vperm.slane %v1552, 0
            %v1625 = vperm.slane %v1553, 0
            %v1626 = vperm.slane %v1554, 0
            %v1627 = vperm.slane %v1555, 0
            %v1628 = vperm.slane %v1556, 0
            %1629 = vset.pattern.permute.xlu0 0
            %1630 = vperm.xlu0 %1629, %v1621
            %v1631 = vpop.permute.xlu0 %1630
            %1633 = vset.pattern.permute.xlu0 0
            %1634 = vperm.xlu0 %1633, %v1622
            %v1635 = vpop.permute.xlu0 %1634
            %1637 = vset.pattern.permute.xlu0 0
            %1638 = vperm.xlu0 %1637, %v1623
            %v1639 = vpop.permute.xlu0 %1638
            %1641 = vset.pattern.permute.xlu0 0
            %1642 = vperm.xlu0 %1641, %v1624
            %v1643 = vpop.permute.xlu0 %1642
            %1645 = vset.pattern.permute.xlu0 0
            %1646 = vperm.xlu0 %1645, %v1625
            %v1647 = vpop.permute.xlu0 %1646
            %1649 = vset.pattern.permute.xlu0 0
            %1650 = vperm.xlu0 %1649, %v1626
            %v1651 = vpop.permute.xlu0 %1650
            %1653 = vset.pattern.permute.xlu0 0
            %1654 = vperm.xlu0 %1653, %v1627
            %v1655 = vpop.permute.xlu0 %1654
            %1657 = vset.pattern.permute.xlu0 0
            %1658 = vperm.xlu0 %1657, %v1628
            %v1659 = vpop.permute.xlu0 %1658
            %v1661 = vadd.f32 %v1613, %v1631
            %v1662 = vadd.f32 %v1614, %v1635
            %v1663 = vadd.f32 %v1615, %v1639
            %v1664 = vadd.f32 %v1616, %v1643
            %v1665 = vadd.f32 %v1617, %v1647
            %v1666 = vadd.f32 %v1618, %v1651
            %v1667 = vadd.f32 %v1619, %v1655
            %v1668 = vadd.f32 %v1620, %v1659
            %1669 = vst.msk [vmem:[%s1564] sm:$0xff] %vm1382, %v1661
            %1670 = vst.msk [vmem:[%s1564 + $0x20] sm:$0xff] %vm1382, %v1662
            %1671 = vst.msk [vmem:[%s1564 + $0x40] sm:$0xff] %vm1382, %v1663
            %1672 = vst.msk [vmem:[%s1564 + $0x60] sm:$0xff] %vm1382, %v1664
            %1673 = vst.msk [vmem:[%s1564 + $0x80] sm:$0xff] %vm1382, %v1665
            %1674 = vst.msk [vmem:[%s1564 + $0xa0] sm:$0xff] %vm1382, %v1666
            %1675 = vst.msk [vmem:[%s1564 + $0xc0] sm:$0xff] %vm1382, %v1667
            %1676 = vst.msk [vmem:[%s1564 + $0xe0] sm:$0xff] %vm1382, %v1668
          $region53: #{tpu_custom_call.1} parent=47 // loop_footer
            %s1562 = sadd.s32 1, %s1558
          $region54: #{tpu_custom_call.1} parent=47 // loop_footer_branch
            %1557 = sbr.rel target = $region50
          $region55: #{tpu_custom_call.1} parent=47 // loop_exit
            _
        $region48: #{tpu_custom_call.1} parent=39 // pred_fallthru
          _
        %s1677 = sand.u32 %s149, 1
        %s1678 = scalar_lea.sflag [#allocation6], %s1677
        %s1679 = sand.u32 %s149, 1
        %s1680 = smul.addr %s1679, 256
        %s1681 = scalar_lea.vmem [#allocation5], %s1680
        // Predicated region
        $region56: #{tpu_custom_call.1} parent=39 // pred_check
          %p1682 = pneg %p159
        $region57: #{tpu_custom_call.1} parent=39 // pred_check_branch
          %1684 = sbr.rel (%p1682) target = $region59
        $region58: #{tpu_custom_call.1} parent=39 // pred_region
          %1686 = vsyncadd %s1678, 0
          %s1687 = smul.addr %s23, 32
          %s1688 = smul.addr %s1687, 8
          %s1689 = scalar_lea.hbm %s5, %s1688
          %s1690 = sshll.u32 %s1681, 4
          %s1691 = int_to_ptr.vmem [resolvable:$true] %s1690
          %s1692 = sshll.u32 %s1689, 4
          %s1693 = int_to_ptr.hbm [resolvable:$true] %s1692
          %1698 = dma.vmem_to_hbm [thread:$0]  %s1691, 4096, %s1693, %s1678, 128, 128, 8
        $region59: #{tpu_custom_call.1} parent=39 // pred_fallthru
          _
      $region40: #{tpu_custom_call.1} parent=5 // pred_fallthru
        _
      %p1699 = scmp.le.s32.totalorder 2, %s14
      // Predicated region
      $region60: #{tpu_custom_call.1} parent=5 // pred_check
        %p1700 = pneg %p1699
      $region61: #{tpu_custom_call.1} parent=5 // pred_check_branch
        %1702 = sbr.rel (%p1700) target = $region63
      $region62: #{tpu_custom_call.1} parent=5 // pred_region
        %s1703 = ssub.s32 %s14, 2
        // Predicated region
        $region64: #{tpu_custom_call.1} parent=62 // pred_check
          %p1704 = pneg %p165
        $region65: #{tpu_custom_call.1} parent=62 // pred_check_branch
          %1706 = sbr.rel (%p1704) target = $region67
        $region66: #{tpu_custom_call.1} parent=62 // pred_region
          %s1707 = sand.u32 %s150, 1
          %s1708 = scalar_lea.sflag [#allocation6], %s1707
          %s1709 = sand.u32 %s150, 1
          %s1710 = smul.addr %s1709, 256
          %s1711 = scalar_lea.vmem [#allocation5], %s1710
          %1713 = dma.done %s1708, 4096
        $region67: #{tpu_custom_call.1} parent=62 // pred_fallthru
          _
      $region63: #{tpu_custom_call.1} parent=5 // pred_fallthru
        _
    $region6: #{tpu_custom_call.1} parent=1 // loop_footer
      %s18 = sadd.s32 1, %s14
    $region7: #{tpu_custom_call.1} parent=1 // loop_footer_branch
      %13 = sbr.rel target = $region3
    $region8: #{tpu_custom_call.1} parent=1 // loop_exit
      _
    %1714 = vsyncpa [#allocation6], 1
    %s1715 = scalar_lea.sflag [#allocation6], 1
    %1716 = vsyncpa %s1715, 1

</llo_original>
